<compile_context>
chip_gen: v5e
topology: v5e:2x2
jax: 0.10.0
libtpu: 0.0.40
codegen_flags: <defaults>
</compile_context>

<pallas_src>
import functools
import math

import jax
import jax.numpy as jnp
import numpy as np
from jax.experimental import pallas as pl
from jax.experimental.pallas import tpu as pltpu


# ----------------------------------------------------------------------------
# Kernel
# ----------------------------------------------------------------------------
def transformer_block_kernel(x_ref, wqkv_ref, wo_ref, w1_ref, w2_ref, w3_ref,
                             attn_nw_ref, ffn_nw_ref, cos_ref, sin_ref,
                             mask_ref, out_ref,
                             *, n_heads, head_dim, eps, compute_dtype):
    f32 = jnp.float32
    x = x_ref[0]                                   # (N, D) f32 rows
    N, D = x.shape
    half = head_dim // 2
    sm_scale = 1.0 / math.sqrt(head_dim)

    # ---------------- attention RMSNorm (f32, VPU/EUP) ----------------
    xn = x * jax.lax.rsqrt(jnp.mean(x * x, axis=-1, keepdims=True) + eps)
    xn = xn * attn_nw_ref[...]                     # (1, D) broadcast
    xn_c = xn.astype(compute_dtype)

    # ---------------- fused head-major QKV projection (MXU) -----------
    # wqkv is (3*n_heads, D, head_dim): [wq heads | wk heads | wv heads];
    # wq/wk columns are pre-permuted to rotate-half (de-interleaved) layout.
    xb = jnp.broadcast_to(xn_c[None], (3 * n_heads, N, D))
    qkv = jnp.einsum("hnd,hdk->hnk", xb, wqkv_ref[...],
                     preferred_element_type=f32)   # (3H, N, hd) f32
    q = qkv[:n_heads]
    k = qkv[n_heads:2 * n_heads]
    v = qkv[2 * n_heads:]

    # ---------------- rotary embedding: rotate-half form (VPU only) ---
    cos = cos_ref[...][None]                       # (1, N, hd)
    sin = sin_ref[...][None]

    def rope(t):                                   # t: (H, N, hd)
        rot = jnp.concatenate([-t[..., half:], t[..., :half]], axis=-1)
        return t * cos + rot * sin

    q = rope(q) * sm_scale                         # fold 1/sqrt(hd) into q
    k = rope(k)

    # ---------------- batched attention over heads (MXU) --------------
    s = jnp.einsum("hqd,hkd->hqk",
                   q.astype(compute_dtype), k.astype(compute_dtype),
                   preferred_element_type=f32)     # (H, N, N)
    s = s + mask_ref[...][None]                    # additive causal (+block-diag)
    s = s - jnp.max(s, axis=-1, keepdims=True)
    e = jnp.exp(s)
    p = e * pl.reciprocal(jnp.sum(e, axis=-1, keepdims=True), approx=True)
    o = jnp.einsum("hqk,hkd->hqd",
                   p.astype(compute_dtype), v.astype(compute_dtype),
                   preferred_element_type=f32)     # (H, N, hd)

    # lane-dense (N, D) operand for the wo projection (no VMEM scratch)
    attn = jnp.concatenate([o[h] for h in range(n_heads)], axis=-1)
    attn_out = jnp.dot(attn.astype(compute_dtype), wo_ref[...],
                       preferred_element_type=f32)
    h1 = x + attn_out                              # first residual (f32)

    # ---------------- FFN RMSNorm + SwiGLU -----------------------------
    hn = h1 * jax.lax.rsqrt(jnp.mean(h1 * h1, axis=-1, keepdims=True) + eps)
    hn = (hn * ffn_nw_ref[...]).astype(compute_dtype)
    a1 = jnp.dot(hn, w1_ref[...], preferred_element_type=f32)
    a3 = jnp.dot(hn, w3_ref[...], preferred_element_type=f32)
    silu = a1 * pl.reciprocal(1.0 + jnp.exp(-a1), approx=True)      # F.silu
    ff = jnp.dot((silu * a3).astype(compute_dtype), w2_ref[...],
                 preferred_element_type=f32)

    out_ref[0] = (h1 + ff).astype(out_ref.dtype)   # second residual


# ----------------------------------------------------------------------------
# Wrapper
# ----------------------------------------------------------------------------
def transformer_block(x, prepped, cos, sin, mask, *, n_heads, eps=1e-6,
                      fold_batch=True, compute_dtype=jnp.bfloat16):
    """x: (B, S, D) f32.  prepped: output of prepare_params.
    cos/sin: (rows, head_dim); mask: (rows, rows) additive,
    where rows = B*S if fold_batch else S."""
    B, S, D = x.shape
    head_dim = D // n_heads
    H = prepped["w1"].shape[1]

    if fold_batch:
        # single grid step, all B*S rows in one MXU pass (best on 1-TC v5e/v6e)
        grid = (1,)
        rows = B * S
        x_in = x.reshape(1, rows, D)
        semantics = ("arbitrary",)
    else:
        # one batch element per grid step ("parallel" -> v7x's 2 TensorCores)
        grid = (B,)
        rows = S
        x_in = x
        semantics = ("parallel",)

    assert cos.shape == (rows, head_dim) and sin.shape == (rows, head_dim)
    assert mask.shape == (rows, rows)

    kernel = functools.partial(transformer_block_kernel, n_heads=n_heads,
                               head_dim=head_dim, eps=eps,
                               compute_dtype=compute_dtype)
    c2 = lambda b: (0, 0)
    c3 = lambda b: (0, 0, 0)

    out = pl.pallas_call(
        kernel,
        out_shape=jax.ShapeDtypeStruct(x_in.shape, x.dtype),
        grid_spec=pltpu.PrefetchScalarGridSpec(
            num_scalar_prefetch=0,
            grid=grid,
            in_specs=[
                pl.BlockSpec((1, rows, D), lambda b: (b, 0, 0)),     # x rows
                pl.BlockSpec((3 * n_heads, D, head_dim), c3),        # wqkv (head-major)
                pl.BlockSpec((D, D), c2),                            # wo
                pl.BlockSpec((D, H), c2),                            # w1
                pl.BlockSpec((H, D), c2),                            # w2
                pl.BlockSpec((D, H), c2),                            # w3
                pl.BlockSpec((1, D), c2),                            # attention_norm.weight
                pl.BlockSpec((1, D), c2),                            # ffn_norm.weight
                pl.BlockSpec((rows, head_dim), c2),                  # rope cos
                pl.BlockSpec((rows, head_dim), c2),                  # rope sin
                pl.BlockSpec((rows, rows), c2),                      # additive mask
            ],
            out_specs=pl.BlockSpec((1, rows, D), lambda b: (b, 0, 0)),
        ),
        compiler_params=pltpu.CompilerParams(dimension_semantics=semantics),
    )(x_in, prepped["wqkv"], prepped["wo"], prepped["w1"], prepped["w2"],
      prepped["w3"], prepped["attn_norm"], prepped["ffn_norm"], cos, sin, mask)

    return out.reshape(B, S, D)


# ----------------------------------------------------------------------------
# Offline weight / table preparation
# ----------------------------------------------------------------------------
def prepare_params(params, n_heads, compute_dtype=jnp.bfloat16):
    """Head-major QKV stacking, per-head de-interleave of wq/wk output columns
    (so RoPE becomes rotate-half in-kernel), and bf16 cast for MXU operands."""
    D = params["wq"].shape[0]
    hd = D // n_heads
    # within-head column permutation: [0,2,...,hd-2, 1,3,...,hd-1]
    perm = np.concatenate([np.arange(0, hd, 2), np.arange(1, hd, 2)])

    def head_major(w, permute):
        w3 = jnp.reshape(w, (D, n_heads, hd))      # out col c -> (head c//hd, c%hd)
        if permute:
            w3 = w3[:, :, perm]
        return jnp.transpose(w3, (1, 0, 2))        # (n_heads, D, hd)

    wqkv = jnp.concatenate([head_major(params["wq"], True),
                            head_major(params["wk"], True),
                            head_major(params["wv"], False)],
                           axis=0).astype(compute_dtype)
    return {
        "wqkv": wqkv,
        "wo": params["wo"].astype(compute_dtype),
        "w1": params["w1"].astype(compute_dtype),
        "w2": params["w2"].astype(compute_dtype),
        "w3": params["w3"].astype(compute_dtype),
        "attn_norm": params["attn_norm"].astype(jnp.float32),
        "ffn_norm": params["ffn_norm"].astype(jnp.float32),
    }


def make_rope_tables(positions, head_dim, theta=10000.0):
    """cos/sin in rotate-half layout, shape (rows, head_dim)."""
    freqs = 1.0 / (theta ** (np.arange(0, head_dim, 2, dtype=np.float32) / head_dim))
    ang = np.outer(np.asarray(positions, np.float32), freqs)          # (rows, hd/2)
    cos = np.concatenate([np.cos(ang), np.cos(ang)], axis=1)
    sin = np.concatenate([np.sin(ang), np.sin(ang)], axis=1)
    return jnp.asarray(cos, jnp.float32), jnp.asarray(sin, jnp.float32)


def make_causal_mask(S):
    r = np.arange(S)[:, None]
    c = np.arange(S)[None, :]
    return np.where(c <= r, 0.0, -1e30).astype(np.float32)


def make_attention_inputs(B, S, head_dim, fold_batch):
    if fold_batch:
        pos = np.tile(np.arange(S), B)                                # rows = B*S
        cos, sin = make_rope_tables(pos, head_dim)
        mask = np.full((B * S, B * S), -1e30, np.float32)
        causal = make_causal_mask(S)
        for b in range(B):
            mask[b * S:(b + 1) * S, b * S:(b + 1) * S] = causal
    else:
        cos, sin = make_rope_tables(np.arange(S), head_dim)
        mask = make_causal_mask(S)
    return cos, sin, jnp.asarray(mask)


# ----------------------------------------------------------------------------
# Pure-JAX f32 reference (matches the PyTorch TransformerBlock forward,
# start_pos=0, causal mask, no KV cache)
# ----------------------------------------------------------------------------
def reference_block(x, params, *, n_heads, eps):
    B, S, D = x.shape
    hd = D // n_heads

    def rmsnorm(t, w):
        return t * jax.lax.rsqrt(jnp.mean(t * t, axis=-1, keepdims=True) + eps) * w

    xn = rmsnorm(x, params["attn_norm"][0])
    q = (xn @ params["wq"]).reshape(B, S, n_heads, hd)
    k = (xn @ params["wk"]).reshape(B, S, n_heads, hd)
    v = (xn @ params["wv"]).reshape(B, S, n_heads, hd)

    freqs = 1.0 / (10000.0 ** (np.arange(0, hd, 2, dtype=np.float32) / hd))
    ang = np.outer(np.arange(S, dtype=np.float32), freqs)             # (S, hd/2)
    c = jnp.asarray(np.cos(ang))[None, :, None, :]
    s = jnp.asarray(np.sin(ang))[None, :, None, :]

    def rope(t):                                   # interleaved complex rotation
        tr = t.reshape(B, S, n_heads, hd // 2, 2)
        x0, x1 = tr[..., 0], tr[..., 1]
        return jnp.stack([x0 * c - x1 * s, x1 * c + x0 * s],
                         axis=-1).reshape(B, S, n_heads, hd)

    q, k = rope(q), rope(k)
    q, k, v = (t.transpose(0, 2, 1, 3) for t in (q, k, v))            # (B, H, S, hd)
    scores = jnp.einsum("bhqd,bhkd->bhqk", q, k) / math.sqrt(hd)
    scores = scores + jnp.asarray(make_causal_mask(S))[None, None]
    p = jax.nn.softmax(scores, axis=-1)
    o = jnp.einsum("bhqk,bhkd->bhqd", p, v)
    o = o.transpose(0, 2, 1, 3).reshape(B, S, D)
    h = x + o @ params["wo"]
    hn = rmsnorm(h, params["ffn_norm"][0])
    ff = (jax.nn.silu(hn @ params["w1"]) * (hn @ params["w3"])) @ params["w2"]
    return h + ff


# ----------------------------------------------------------------------------
if __name__ == "__main__":
    # ModelArgs: dim=64, n_heads=4, multiple_of=32, norm_eps=1e-6, max_seq_len=8
    B, S, D = 2, 8, 64
    n_heads = 4
    head_dim = D // n_heads
    multiple_of = 32
    eps = 1e-6

    # FeedForward hidden: 4*dim -> 2/3 -> round up to multiple_of  (= 192)
    hidden = 4 * D
    hidden = int(2 * hidden / 3)
    hidden = multiple_of * ((hidden + multiple_of - 1) // multiple_of)

    key = jax.random.PRNGKey(0)
    ks = jax.random.split(key, 8)
    w_scale = 0.02
    params = {
        "wq": w_scale * jax.random.normal(ks[0], (D, D), jnp.float32),
        "wk": w_scale * jax.random.normal(ks[1], (D, D), jnp.float32),
        "wv": w_scale * jax.random.normal(ks[2], (D, D), jnp.float32),
        "wo": w_scale * jax.random.normal(ks[3], (D, D), jnp.float32),
        "w1": w_scale * jax.random.normal(ks[4], (D, hidden), jnp.float32),
        "w2": w_scale * jax.random.normal(ks[5], (hidden, D), jnp.float32),
        "w3": w_scale * jax.random.normal(ks[6], (D, hidden), jnp.float32),
        "attn_norm": jnp.ones((1, D), jnp.float32),   # RMSNorm weight init = ones
        "ffn_norm": jnp.ones((1, D), jnp.float32),
    }
    x = jax.random.normal(ks[7], (B, S, D), jnp.float32)

    # TODO(synk): KV-cache decode path (use_cache=True / start_pos>0) and the
    # Column/RowParallelLinear sharding are not implemented; this is the dense
    # single-device start_pos=0 forward.
    prepped = prepare_params(params, n_heads)

    # (a) batch folded into one grid step (single-TC v5e/v6e friendly)
    cos_f, sin_f, mask_f = make_attention_inputs(B, S, head_dim, fold_batch=True)
    out_folded = transformer_block(x, prepped, cos_f, sin_f, mask_f,
                                   n_heads=n_heads, eps=eps, fold_batch=True)
    out_folded = jax.block_until_ready(out_folded)

    # (b) grid=(B,) "parallel" variant (v7x: one batch element per TensorCore)
    cos_b, sin_b, mask_b = make_attention_inputs(B, S, head_dim, fold_batch=False)
    out_batched = transformer_block(x, prepped, cos_b, sin_b, mask_b,
                                    n_heads=n_heads, eps=eps, fold_batch=False)
    out_batched = jax.block_until_ready(out_batched)

    ref = reference_block(x, params, n_heads=n_heads, eps=eps)

    assert out_folded.shape == (B, S, D)
    assert bool(jnp.all(jnp.isfinite(out_folded)))
    assert bool(jnp.all(jnp.isfinite(out_batched)))
    # bf16 MXU operands + approx EUP reciprocals vs. a pure f32 reference
    assert bool(jnp.allclose(out_folded, ref, atol=1e-2, rtol=1e-2)), \
        float(jnp.max(jnp.abs(out_folded - ref)))
    assert bool(jnp.allclose(out_batched, ref, atol=1e-2, rtol=1e-2)), \
        float(jnp.max(jnp.abs(out_batched - ref)))
    assert bool(jnp.allclose(out_folded, out_batched, atol=1e-3, rtol=1e-3))
    print("KERNEL_OK")
</pallas_src>

<mosaic_0001>
module attributes {stable_mosaic.version = 11 : i64} {
  func.func @transformer_block_kernel(%arg0: i32, %arg1: memref<1x16x64xf32, #tpu.memory_space<vmem>>, %arg2: memref<12x64x16xbf16, #tpu.memory_space<vmem>>, %arg3: memref<64x64xbf16, #tpu.memory_space<vmem>>, %arg4: memref<64x192xbf16, #tpu.memory_space<vmem>>, %arg5: memref<192x64xbf16, #tpu.memory_space<vmem>>, %arg6: memref<64x192xbf16, #tpu.memory_space<vmem>>, %arg7: memref<1x64xf32, #tpu.memory_space<vmem>>, %arg8: memref<1x64xf32, #tpu.memory_space<vmem>>, %arg9: memref<16x16xf32, #tpu.memory_space<vmem>>, %arg10: memref<16x16xf32, #tpu.memory_space<vmem>>, %arg11: memref<16x16xf32, #tpu.memory_space<vmem>>, %arg12: memref<1x16x64xf32, #tpu.memory_space<vmem>>) attributes {dimension_semantics = [#tpu.dimension_semantics<arbitrary>], iteration_bounds = array<i64: 1>, scalar_prefetch = 0 : i64, scratch_operands = 0 : i64, tpu.core_type = #tpu.core_type<tc>, window_params = [{transform_indices = @transform_0, window_bounds = array<i64: 1, 16, 64>}, {pipeline_mode = #tpu.pipeline_mode<synchronous>, transform_indices = @transform_1, window_bounds = array<i64: 12, 64, 16>}, {pipeline_mode = #tpu.pipeline_mode<synchronous>, transform_indices = @transform_2, window_bounds = array<i64: 64, 64>}, {pipeline_mode = #tpu.pipeline_mode<synchronous>, transform_indices = @transform_3, window_bounds = array<i64: 64, 192>}, {pipeline_mode = #tpu.pipeline_mode<synchronous>, transform_indices = @transform_4, window_bounds = array<i64: 192, 64>}, {pipeline_mode = #tpu.pipeline_mode<synchronous>, transform_indices = @transform_5, window_bounds = array<i64: 64, 192>}, {pipeline_mode = #tpu.pipeline_mode<synchronous>, transform_indices = @transform_6, window_bounds = array<i64: 1, 64>}, {pipeline_mode = #tpu.pipeline_mode<synchronous>, transform_indices = @transform_7, window_bounds = array<i64: 1, 64>}, {pipeline_mode = #tpu.pipeline_mode<synchronous>, transform_indices = @transform_8, window_bounds = array<i64: 16, 16>}, {pipeline_mode = #tpu.pipeline_mode<synchronous>, transform_indices = @transform_9, window_bounds = array<i64: 16, 16>}, {pipeline_mode = #tpu.pipeline_mode<synchronous>, transform_indices = @transform_10, window_bounds = array<i64: 16, 16>}, {transform_indices = @transform_11, window_bounds = array<i64: 1, 16, 64>}]} {
    %c0 = arith.constant 0 : index
    %c0_0 = arith.constant 0 : index
    %c0_1 = arith.constant 0 : index
    %0 = vector.load %arg1[%c0, %c0_0, %c0_1] : memref<1x16x64xf32, #tpu.memory_space<vmem>>, vector<1x16x64xf32>
    %1 = vector.shape_cast %0 : vector<1x16x64xf32> to vector<16x64xf32>
    %2 = arith.mulf %1, %1 : vector<16x64xf32>
    %cst = arith.constant dense<0.000000e+00> : vector<16xf32>
    %3 = vector.multi_reduction <add>, %2, %cst [1] : vector<16x64xf32> to vector<16xf32>
    %4 = vector.shape_cast %3 : vector<16xf32> to vector<16x1xf32>
    %cst_2 = arith.constant 6.400000e+01 : f32
    %5 = vector.broadcast %cst_2 : f32 to vector<16x1xf32>
    %6 = arith.divf %4, %5 : vector<16x1xf32>
    %cst_3 = arith.constant 9.99999997E-7 : f32
    %7 = vector.broadcast %cst_3 : f32 to vector<16x1xf32>
    %8 = arith.addf %6, %7 : vector<16x1xf32>
    %9 = math.rsqrt %8 : vector<16x1xf32>
    %10 = vector.broadcast %9 : vector<16x1xf32> to vector<16x64xf32>
    %11 = arith.mulf %1, %10 : vector<16x64xf32>
    %c0_4 = arith.constant 0 : index
    %c0_5 = arith.constant 0 : index
    %12 = vector.load %arg7[%c0_4, %c0_5] : memref<1x64xf32, #tpu.memory_space<vmem>>, vector<1x64xf32>
    %13 = vector.broadcast %12 : vector<1x64xf32> to vector<16x64xf32>
    %14 = arith.mulf %11, %13 : vector<16x64xf32>
    %15 = arith.truncf %14 : vector<16x64xf32> to vector<16x64xbf16>
    %16 = vector.shape_cast %15 : vector<16x64xbf16> to vector<1x16x64xbf16>
    %17 = vector.shape_cast %16 : vector<1x16x64xbf16> to vector<1x16x64xbf16>
    %18 = vector.broadcast %17 : vector<1x16x64xbf16> to vector<12x16x64xbf16>
    %c0_6 = arith.constant 0 : index
    %c0_7 = arith.constant 0 : index
    %c0_8 = arith.constant 0 : index
    %19 = vector.load %arg2[%c0_6, %c0_7, %c0_8] : memref<12x64x16xbf16, #tpu.memory_space<vmem>>, vector<12x64x16xbf16>
    "tpu.trace_start"() <{level = 10 : i32, message = "hnd,hdk->hnk"}> : () -> ()
    %cst_9 = arith.constant dense<0.000000e+00> : vector<12x16x16xf32>
    %20 = tpu.matmul %18, %19, %cst_9 {dimension_numbers = #tpu.dot_dimension_numbers<[2], [1], [1], [2], [0, 0, 0, 1, 1, 2], [0], [0]>} : vector<12x16x64xbf16>, vector<12x64x16xbf16>, vector<12x16x16xf32> -> vector<12x16x16xf32>
    "tpu.trace_stop"() : () -> ()
    %21 = vector.extract_strided_slice %20 {offsets = [0, 0, 0], sizes = [4, 16, 16], strides = [1, 1, 1]} : vector<12x16x16xf32> to vector<4x16x16xf32>
    %22 = vector.extract_strided_slice %20 {offsets = [4, 0, 0], sizes = [4, 16, 16], strides = [1, 1, 1]} : vector<12x16x16xf32> to vector<4x16x16xf32>
    %23 = vector.extract_strided_slice %20 {offsets = [8, 0, 0], sizes = [4, 16, 16], strides = [1, 1, 1]} : vector<12x16x16xf32> to vector<4x16x16xf32>
    %c0_10 = arith.constant 0 : index
    %c0_11 = arith.constant 0 : index
    %24 = vector.load %arg9[%c0_10, %c0_11] : memref<16x16xf32, #tpu.memory_space<vmem>>, vector<16x16xf32>
    %25 = vector.shape_cast %24 : vector<16x16xf32> to vector<1x16x16xf32>
    %c0_12 = arith.constant 0 : index
    %c0_13 = arith.constant 0 : index
    %26 = vector.load %arg10[%c0_12, %c0_13] : memref<16x16xf32, #tpu.memory_space<vmem>>, vector<16x16xf32>
    %27 = vector.shape_cast %26 : vector<16x16xf32> to vector<1x16x16xf32>
    %28 = vector.extract_strided_slice %21 {offsets = [0, 0, 8], sizes = [4, 16, 8], strides = [1, 1, 1]} : vector<4x16x16xf32> to vector<4x16x8xf32>
    %cst_14 = arith.constant 0.000000e+00 : f32
    %29 = vector.broadcast %cst_14 : f32 to vector<4x16x8xf32>
    %30 = arith.subf %29, %28 : vector<4x16x8xf32>
    %31 = vector.extract_strided_slice %21 {offsets = [0, 0, 0], sizes = [4, 16, 8], strides = [1, 1, 1]} : vector<4x16x16xf32> to vector<4x16x8xf32>
    %32 = tpu.concatenate %30, %31 in 2 : vector<4x16x8xf32>, vector<4x16x8xf32> -> vector<4x16x16xf32>
    %33 = vector.broadcast %25 : vector<1x16x16xf32> to vector<4x16x16xf32>
    %34 = arith.mulf %21, %33 : vector<4x16x16xf32>
    %35 = vector.broadcast %27 : vector<1x16x16xf32> to vector<4x16x16xf32>
    %36 = arith.mulf %32, %35 : vector<4x16x16xf32>
    %37 = arith.addf %34, %36 : vector<4x16x16xf32>
    %cst_15 = arith.constant 2.500000e-01 : f32
    %38 = vector.broadcast %cst_15 : f32 to vector<4x16x16xf32>
    %39 = arith.mulf %37, %38 : vector<4x16x16xf32>
    %40 = vector.extract_strided_slice %22 {offsets = [0, 0, 8], sizes = [4, 16, 8], strides = [1, 1, 1]} : vector<4x16x16xf32> to vector<4x16x8xf32>
    %cst_16 = arith.constant 0.000000e+00 : f32
    %41 = vector.broadcast %cst_16 : f32 to vector<4x16x8xf32>
    %42 = arith.subf %41, %40 : vector<4x16x8xf32>
    %43 = vector.extract_strided_slice %22 {offsets = [0, 0, 0], sizes = [4, 16, 8], strides = [1, 1, 1]} : vector<4x16x16xf32> to vector<4x16x8xf32>
    %44 = tpu.concatenate %42, %43 in 2 : vector<4x16x8xf32>, vector<4x16x8xf32> -> vector<4x16x16xf32>
    %45 = vector.broadcast %25 : vector<1x16x16xf32> to vector<4x16x16xf32>
    %46 = arith.mulf %22, %45 : vector<4x16x16xf32>
    %47 = vector.broadcast %27 : vector<1x16x16xf32> to vector<4x16x16xf32>
    %48 = arith.mulf %44, %47 : vector<4x16x16xf32>
    %49 = arith.addf %46, %48 : vector<4x16x16xf32>
    %50 = arith.truncf %39 : vector<4x16x16xf32> to vector<4x16x16xbf16>
    %51 = arith.truncf %49 : vector<4x16x16xf32> to vector<4x16x16xbf16>
    "tpu.trace_start"() <{level = 10 : i32, message = "hqd,hkd->hqk"}> : () -> ()
    %cst_17 = arith.constant dense<0.000000e+00> : vector<4x16x16xf32>
    %52 = tpu.matmul %50, %51, %cst_17 {dimension_numbers = #tpu.dot_dimension_numbers<[2], [2], [1], [1], [0, 0, 0, 1, 1, 1], [0], [0]>} : vector<4x16x16xbf16>, vector<4x16x16xbf16>, vector<4x16x16xf32> -> vector<4x16x16xf32>
    "tpu.trace_stop"() : () -> ()
    %c0_18 = arith.constant 0 : index
    %c0_19 = arith.constant 0 : index
    %53 = vector.load %arg11[%c0_18, %c0_19] : memref<16x16xf32, #tpu.memory_space<vmem>>, vector<16x16xf32>
    %54 = vector.shape_cast %53 : vector<16x16xf32> to vector<1x16x16xf32>
    %55 = vector.broadcast %54 : vector<1x16x16xf32> to vector<4x16x16xf32>
    %56 = arith.addf %52, %55 : vector<4x16x16xf32>
    %cst_20 = arith.constant dense<0xFF800000> : vector<4x16xf32>
    %57 = vector.multi_reduction <maximumf>, %56, %cst_20 [2] : vector<4x16x16xf32> to vector<4x16xf32>
    %58 = vector.shape_cast %57 : vector<4x16xf32> to vector<4x16x1xf32>
    %59 = vector.broadcast %58 : vector<4x16x1xf32> to vector<4x16x16xf32>
    %60 = arith.subf %56, %59 : vector<4x16x16xf32>
    %61 = math.exp %60 : vector<4x16x16xf32>
    %cst_21 = arith.constant dense<0.000000e+00> : vector<4x16xf32>
    %62 = vector.multi_reduction <add>, %61, %cst_21 [2] : vector<4x16x16xf32> to vector<4x16xf32>
    %63 = vector.shape_cast %62 : vector<4x16xf32> to vector<4x16x1xf32>
    %64 = tpu.reciprocal %63 {approx = true} : vector<4x16x1xf32> -> vector<4x16x1xf32>
    %65 = vector.broadcast %64 : vector<4x16x1xf32> to vector<4x16x16xf32>
    %66 = arith.mulf %61, %65 : vector<4x16x16xf32>
    %67 = arith.truncf %66 : vector<4x16x16xf32> to vector<4x16x16xbf16>
    %68 = arith.truncf %23 : vector<4x16x16xf32> to vector<4x16x16xbf16>
    "tpu.trace_start"() <{level = 10 : i32, message = "hqk,hkd->hqd"}> : () -> ()
    %cst_22 = arith.constant dense<0.000000e+00> : vector<4x16x16xf32>
    %69 = tpu.matmul %67, %68, %cst_22 {dimension_numbers = #tpu.dot_dimension_numbers<[2], [1], [1], [2], [0, 0, 0, 1, 1, 2], [0], [0]>} : vector<4x16x16xbf16>, vector<4x16x16xbf16>, vector<4x16x16xf32> -> vector<4x16x16xf32>
    "tpu.trace_stop"() : () -> ()
    %70 = vector.extract_strided_slice %69 {offsets = [0, 0, 0], sizes = [1, 16, 16], strides = [1, 1, 1]} : vector<4x16x16xf32> to vector<1x16x16xf32>
    %71 = vector.shape_cast %70 : vector<1x16x16xf32> to vector<16x16xf32>
    %72 = vector.extract_strided_slice %69 {offsets = [1, 0, 0], sizes = [1, 16, 16], strides = [1, 1, 1]} : vector<4x16x16xf32> to vector<1x16x16xf32>
    %73 = vector.shape_cast %72 : vector<1x16x16xf32> to vector<16x16xf32>
    %74 = vector.extract_strided_slice %69 {offsets = [2, 0, 0], sizes = [1, 16, 16], strides = [1, 1, 1]} : vector<4x16x16xf32> to vector<1x16x16xf32>
    %75 = vector.shape_cast %74 : vector<1x16x16xf32> to vector<16x16xf32>
    %76 = vector.extract_strided_slice %69 {offsets = [3, 0, 0], sizes = [1, 16, 16], strides = [1, 1, 1]} : vector<4x16x16xf32> to vector<1x16x16xf32>
    %77 = vector.shape_cast %76 : vector<1x16x16xf32> to vector<16x16xf32>
    %78 = tpu.concatenate %71, %73, %75, %77 in 1 : vector<16x16xf32>, vector<16x16xf32>, vector<16x16xf32>, vector<16x16xf32> -> vector<16x64xf32>
    %79 = arith.truncf %78 : vector<16x64xf32> to vector<16x64xbf16>
    %c0_23 = arith.constant 0 : index
    %c0_24 = arith.constant 0 : index
    %80 = vector.load %arg3[%c0_23, %c0_24] : memref<64x64xbf16, #tpu.memory_space<vmem>>, vector<64x64xbf16>
    %cst_25 = arith.constant dense<0.000000e+00> : vector<16x64xf32>
    %81 = tpu.matmul %79, %80, %cst_25 {dimension_numbers = #tpu.dot_dimension_numbers<[1], [0], [0], [1], [0, 0, 1, 1], [], []>} : vector<16x64xbf16>, vector<64x64xbf16>, vector<16x64xf32> -> vector<16x64xf32>
    %82 = arith.addf %1, %81 : vector<16x64xf32>
    %83 = arith.mulf %82, %82 : vector<16x64xf32>
    %cst_26 = arith.constant dense<0.000000e+00> : vector<16xf32>
    %84 = vector.multi_reduction <add>, %83, %cst_26 [1] : vector<16x64xf32> to vector<16xf32>
    %85 = vector.shape_cast %84 : vector<16xf32> to vector<16x1xf32>
    %cst_27 = arith.constant 6.400000e+01 : f32
    %86 = vector.broadcast %cst_27 : f32 to vector<16x1xf32>
    %87 = arith.divf %85, %86 : vector<16x1xf32>
    %cst_28 = arith.constant 9.99999997E-7 : f32
    %88 = vector.broadcast %cst_28 : f32 to vector<16x1xf32>
    %89 = arith.addf %87, %88 : vector<16x1xf32>
    %90 = math.rsqrt %89 : vector<16x1xf32>
    %91 = vector.broadcast %90 : vector<16x1xf32> to vector<16x64xf32>
    %92 = arith.mulf %82, %91 : vector<16x64xf32>
    %c0_29 = arith.constant 0 : index
    %c0_30 = arith.constant 0 : index
    %93 = vector.load %arg8[%c0_29, %c0_30] : memref<1x64xf32, #tpu.memory_space<vmem>>, vector<1x64xf32>
    %94 = vector.broadcast %93 : vector<1x64xf32> to vector<16x64xf32>
    %95 = arith.mulf %92, %94 : vector<16x64xf32>
    %96 = arith.truncf %95 : vector<16x64xf32> to vector<16x64xbf16>
    %c0_31 = arith.constant 0 : index
    %c0_32 = arith.constant 0 : index
    %97 = vector.load %arg4[%c0_31, %c0_32] : memref<64x192xbf16, #tpu.memory_space<vmem>>, vector<64x192xbf16>
    %cst_33 = arith.constant dense<0.000000e+00> : vector<16x192xf32>
    %98 = tpu.matmul %96, %97, %cst_33 {dimension_numbers = #tpu.dot_dimension_numbers<[1], [0], [0], [1], [0, 0, 1, 1], [], []>} : vector<16x64xbf16>, vector<64x192xbf16>, vector<16x192xf32> -> vector<16x192xf32>
    %c0_34 = arith.constant 0 : index
    %c0_35 = arith.constant 0 : index
    %99 = vector.load %arg6[%c0_34, %c0_35] : memref<64x192xbf16, #tpu.memory_space<vmem>>, vector<64x192xbf16>
    %cst_36 = arith.constant dense<0.000000e+00> : vector<16x192xf32>
    %100 = tpu.matmul %96, %99, %cst_36 {dimension_numbers = #tpu.dot_dimension_numbers<[1], [0], [0], [1], [0, 0, 1, 1], [], []>} : vector<16x64xbf16>, vector<64x192xbf16>, vector<16x192xf32> -> vector<16x192xf32>
    %cst_37 = arith.constant 0.000000e+00 : f32
    %101 = vector.broadcast %cst_37 : f32 to vector<16x192xf32>
    %102 = arith.subf %101, %98 : vector<16x192xf32>
    %103 = math.exp %102 : vector<16x192xf32>
    %cst_38 = arith.constant 1.000000e+00 : f32
    %104 = vector.broadcast %cst_38 : f32 to vector<16x192xf32>
    %105 = arith.addf %104, %103 : vector<16x192xf32>
    %106 = tpu.reciprocal %105 {approx = true} : vector<16x192xf32> -> vector<16x192xf32>
    %107 = arith.mulf %98, %106 : vector<16x192xf32>
    %108 = arith.mulf %107, %100 : vector<16x192xf32>
    %109 = arith.truncf %108 : vector<16x192xf32> to vector<16x192xbf16>
    %c0_39 = arith.constant 0 : index
    %c0_40 = arith.constant 0 : index
    %110 = vector.load %arg5[%c0_39, %c0_40] : memref<192x64xbf16, #tpu.memory_space<vmem>>, vector<192x64xbf16>
    %cst_41 = arith.constant dense<0.000000e+00> : vector<16x64xf32>
    %111 = tpu.matmul %109, %110, %cst_41 {dimension_numbers = #tpu.dot_dimension_numbers<[1], [0], [0], [1], [0, 0, 1, 1], [], []>} : vector<16x192xbf16>, vector<192x64xbf16>, vector<16x64xf32> -> vector<16x64xf32>
    %112 = arith.addf %82, %111 : vector<16x64xf32>
    %c0_42 = arith.constant 0 : index
    %c0_43 = arith.constant 0 : index
    %c0_44 = arith.constant 0 : index
    %113 = vector.load %arg12[%c0_42, %c0_43, %c0_44] : memref<1x16x64xf32, #tpu.memory_space<vmem>>, vector<1x16x64xf32>
    %114 = vector.shape_cast %113 : vector<1x16x64xf32> to vector<16x64xf32>
    %115 = vector.shape_cast %112 : vector<16x64xf32> to vector<1x16x64xf32>
    tpu.vector_store %arg12[%c0_42, %c0_43, %c0_44], %115 {strides = array<i32>} : memref<1x16x64xf32, #tpu.memory_space<vmem>>, vector<1x16x64xf32>,
    return
  }
  func.func @transform_0(%arg0: i32) -> (i32, i32, i32) {
    %c0_i32 = arith.constant 0 : i32
    %c0_i32_0 = arith.constant 0 : i32
    %c0_i32_1 = arith.constant 0 : i32
    return %arg0, %c0_i32, %c0_i32_0 : i32, i32, i32
  }
  func.func @transform_1(%arg0: i32) -> (i32, i32, i32) {
    %c0_i32 = arith.constant 0 : i32
    %c0_i32_0 = arith.constant 0 : i32
    %c0_i32_1 = arith.constant 0 : i32
    %c0_i32_2 = arith.constant 0 : i32
    return %c0_i32, %c0_i32_0, %c0_i32_1 : i32, i32, i32
  }
  func.func @transform_2(%arg0: i32) -> (i32, i32) {
    %c0_i32 = arith.constant 0 : i32
    %c0_i32_0 = arith.constant 0 : i32
    %c0_i32_1 = arith.constant 0 : i32
    return %c0_i32, %c0_i32_0 : i32, i32
  }
  func.func @transform_3(%arg0: i32) -> (i32, i32) {
    %c0_i32 = arith.constant 0 : i32
    %c0_i32_0 = arith.constant 0 : i32
    %c0_i32_1 = arith.constant 0 : i32
    return %c0_i32, %c0_i32_0 : i32, i32
  }
  func.func @transform_4(%arg0: i32) -> (i32, i32) {
    %c0_i32 = arith.constant 0 : i32
    %c0_i32_0 = arith.constant 0 : i32
    %c0_i32_1 = arith.constant 0 : i32
    return %c0_i32, %c0_i32_0 : i32, i32
  }
  func.func @transform_5(%arg0: i32) -> (i32, i32) {
    %c0_i32 = arith.constant 0 : i32
    %c0_i32_0 = arith.constant 0 : i32
    %c0_i32_1 = arith.constant 0 : i32
    return %c0_i32, %c0_i32_0 : i32, i32
  }
  func.func @transform_6(%arg0: i32) -> (i32, i32) {
    %c0_i32 = arith.constant 0 : i32
    %c0_i32_0 = arith.constant 0 : i32
    %c0_i32_1 = arith.constant 0 : i32
    return %c0_i32, %c0_i32_0 : i32, i32
  }
  func.func @transform_7(%arg0: i32) -> (i32, i32) {
    %c0_i32 = arith.constant 0 : i32
    %c0_i32_0 = arith.constant 0 : i32
    %c0_i32_1 = arith.constant 0 : i32
    return %c0_i32, %c0_i32_0 : i32, i32
  }
  func.func @transform_8(%arg0: i32) -> (i32, i32) {
    %c0_i32 = arith.constant 0 : i32
    %c0_i32_0 = arith.constant 0 : i32
    %c0_i32_1 = arith.constant 0 : i32
    return %c0_i32, %c0_i32_0 : i32, i32
  }
  func.func @transform_9(%arg0: i32) -> (i32, i32) {
    %c0_i32 = arith.constant 0 : i32
    %c0_i32_0 = arith.constant 0 : i32
    %c0_i32_1 = arith.constant 0 : i32
    return %c0_i32, %c0_i32_0 : i32, i32
  }
  func.func @transform_10(%arg0: i32) -> (i32, i32) {
    %c0_i32 = arith.constant 0 : i32
    %c0_i32_0 = arith.constant 0 : i32
    %c0_i32_1 = arith.constant 0 : i32
    return %c0_i32, %c0_i32_0 : i32, i32
  }
  func.func @transform_11(%arg0: i32) -> (i32, i32, i32) {
    %c0_i32 = arith.constant 0 : i32
    %c0_i32_0 = arith.constant 0 : i32
    %c0_i32_1 = arith.constant 0 : i32
    return %arg0, %c0_i32, %c0_i32_0 : i32, i32, i32
  }
}

</mosaic_0001>

<llo_original>
// kernel: tpu_custom_call.1
$region0: #{tpu_custom_call.1}
  #allocation0 [shape = 'u32[]', space=smem, size = 0x4, offset = 0x4, fixed_abs, tag = 'smem constant byte address 0x4 - core index']
  #allocation1 [shape = 'u32[72,128]{1,0:T(1,128)}', space=vmem, size = 0x9000, scoped, tag = 'internal scratch']
  %s0 = inlined_call_operand.vmem [shape: f32[1,16,64], index: 0, kind: input, shape index: {}]
  %s1 = inlined_call_operand.vmem [shape: bf16[12,64,16], index: 1, kind: input, shape index: {}]
  %s2 = inlined_call_operand.vmem [shape: bf16[64,64], index: 2, kind: input, shape index: {}]
  %s3 = inlined_call_operand.vmem [shape: bf16[64,192], index: 3, kind: input, shape index: {}]
  %s4 = inlined_call_operand.vmem [shape: bf16[192,64], index: 4, kind: input, shape index: {}]
  %s5 = inlined_call_operand.vmem [shape: bf16[64,192], index: 5, kind: input, shape index: {}]
  %s6 = inlined_call_operand.vmem [shape: f32[1,64], index: 6, kind: input, shape index: {}]
  %s7 = inlined_call_operand.vmem [shape: f32[1,64], index: 7, kind: input, shape index: {}]
  %s8 = inlined_call_operand.vmem [shape: f32[16,16], index: 8, kind: input, shape index: {}]
  %s9 = inlined_call_operand.vmem [shape: f32[16,16], index: 9, kind: input, shape index: {}]
  %s10 = inlined_call_operand.vmem [shape: f32[16,16], index: 10, kind: input, shape index: {}]
  %s11 = inlined_call_operand.hbm [shape: f32[1,16,64], index: 11, kind: output, shape index: {}]
  %s12 = sld [smem:[#allocation0]]
  $region54: #{tpu_custom_call.1} parent=0
    _
  %s14 = ssub.s32 1, %s12
  %s15 = scalar_select 0, %s14, %s12
  $region1: #{tpu_custom_call.1} parent=0
    #allocation2 [shape = 'u8[8192]{0}', space=vmem, size = 0x2000, scoped, tag = 'output window, operand 0, single buffered']
    #allocation3 [shape = 's32[1]{0}', space=sflag, size = 0x4, scoped, tag = 'scoped memory for tpu_custom_call.1']
    %16 = vsyncpa [#allocation3], 0
    // Predicated region
    $region2: #{tpu_custom_call.1} parent=1 // pred_check
      _
    $region3: #{tpu_custom_call.1} parent=1 // pred_check_branch
      %18 = sbr.rel (0) target = $region5
    $region4: #{tpu_custom_call.1} parent=1 // pred_region
      _
    $region5: #{tpu_custom_call.1} parent=1 // pred_fallthru
      _
    // Predicated region
    $region6: #{tpu_custom_call.1} parent=1 // pred_check
      _
    $region7: #{tpu_custom_call.1} parent=1 // pred_check_branch
      %20 = sbr.rel (0) target = $region9
    $region8: #{tpu_custom_call.1} parent=1 // pred_region
      _
    $region9: #{tpu_custom_call.1} parent=1 // pred_fallthru
      _
    // Predicated region
    $region10: #{tpu_custom_call.1} parent=1 // pred_check
      _
    $region11: #{tpu_custom_call.1} parent=1 // pred_check_branch
      %22 = sbr.rel (0) target = $region13
    $region12: #{tpu_custom_call.1} parent=1 // pred_region
      _
    $region13: #{tpu_custom_call.1} parent=1 // pred_fallthru
      _
    // Predicated region
    $region14: #{tpu_custom_call.1} parent=1 // pred_check
      _
    $region15: #{tpu_custom_call.1} parent=1 // pred_check_branch
      %24 = sbr.rel (0) target = $region17
    $region16: #{tpu_custom_call.1} parent=1 // pred_region
      _
    $region17: #{tpu_custom_call.1} parent=1 // pred_fallthru
      _
    // Predicated region
    $region18: #{tpu_custom_call.1} parent=1 // pred_check
      _
    $region19: #{tpu_custom_call.1} parent=1 // pred_check_branch
      %26 = sbr.rel (0) target = $region21
    $region20: #{tpu_custom_call.1} parent=1 // pred_region
      _
    $region21: #{tpu_custom_call.1} parent=1 // pred_fallthru
      _
    // Predicated region
    $region22: #{tpu_custom_call.1} parent=1 // pred_check
      _
    $region23: #{tpu_custom_call.1} parent=1 // pred_check_branch
      %28 = sbr.rel (0) target = $region25
    $region24: #{tpu_custom_call.1} parent=1 // pred_region
      _
    $region25: #{tpu_custom_call.1} parent=1 // pred_fallthru
      _
    // Predicated region
    $region26: #{tpu_custom_call.1} parent=1 // pred_check
      _
    $region27: #{tpu_custom_call.1} parent=1 // pred_check_branch
      %30 = sbr.rel (0) target = $region29
    $region28: #{tpu_custom_call.1} parent=1 // pred_region
      _
    $region29: #{tpu_custom_call.1} parent=1 // pred_fallthru
      _
    // Predicated region
    $region30: #{tpu_custom_call.1} parent=1 // pred_check
      _
    $region31: #{tpu_custom_call.1} parent=1 // pred_check_branch
      %32 = sbr.rel (0) target = $region33
    $region32: #{tpu_custom_call.1} parent=1 // pred_region
      _
    $region33: #{tpu_custom_call.1} parent=1 // pred_fallthru
      _
    // Predicated region
    $region34: #{tpu_custom_call.1} parent=1 // pred_check
      _
    $region35: #{tpu_custom_call.1} parent=1 // pred_check_branch
      %34 = sbr.rel (0) target = $region37
    $region36: #{tpu_custom_call.1} parent=1 // pred_region
      _
    $region37: #{tpu_custom_call.1} parent=1 // pred_fallthru
      _
    // Predicated region
    $region38: #{tpu_custom_call.1} parent=1 // pred_check
      _
    $region39: #{tpu_custom_call.1} parent=1 // pred_check_branch
      %36 = sbr.rel (0) target = $region41
    $region40: #{tpu_custom_call.1} parent=1 // pred_region
      _
    $region41: #{tpu_custom_call.1} parent=1 // pred_fallthru
      _
    // Predicated region
    $region42: #{tpu_custom_call.1} parent=1 // pred_check
      _
    $region43: #{tpu_custom_call.1} parent=1 // pred_check_branch
      %38 = sbr.rel (0) target = $region45
    $region44: #{tpu_custom_call.1} parent=1 // pred_region
      _
    $region45: #{tpu_custom_call.1} parent=1 // pred_fallthru
      _
    %v40 = vld [vmem:[%s0] sm:$0xff]
    %v41 = vld [vmem:[%s0 + $0x8] sm:$0xff]
    %v42 = vmul.f32 %v40, %v40
    %v43 = vmul.f32 %v41, %v41
    %vm44 = vcmask 523264
    %v45 = vsel %vm44, %v42, 0.0
    %46 = vadd.xlane.f32.xlu0 %v45
    %v47 = vpop.xlane.xlu0 %46
    %v48 = vsel %vm44, %v43, 0.0
    %49 = vadd.xlane.f32.xlu0 %v48
    %v50 = vpop.xlane.xlu0 %49
    %v51 = vrcp.pop 64.0
    %v52 = vmul.f32 64.0, %v51
    %v53 = vsub.f32 1.0, %v52
    %v54 = vmul.f32 %v51, %v53
    %v55 = vadd.f32 %v51, %v54
    %vm56 = vweird.f32 %v51
    %v57 = vsel %vm56, %v51, %v55
    %v58 = vmul.f32 %v47, %v57
    %v59 = vmul.f32 %v50, %v57
    %v60 = vadd.f32 %v58, 1e-06
    %v61 = vadd.f32 %v59, 1e-06
    %v62 = vrsqrt.pop %v60
    %v63 = vmul.f32 %v62, %v60
    %v64 = vmul.f32 %v63, %v62
    %v65 = vmul.f32 0.5, %v64
    %v66 = vsub.f32 1.5, %v65
    %v67 = vmul.f32 %v62, %v66
    %vm68 = vweird.f32 %v60
    %vm69 = vweird.f32 %v62
    %vm70 = vmor %vm68, %vm69
    %v71 = vsel %vm70, %v62, %v67
    %v72 = vrsqrt.pop %v61
    %v73 = vmul.f32 %v72, %v61
    %v74 = vmul.f32 %v73, %v72
    %v75 = vmul.f32 0.5, %v74
    %v76 = vsub.f32 1.5, %v75
    %v77 = vmul.f32 %v72, %v76
    %vm78 = vweird.f32 %v61
    %vm79 = vweird.f32 %v72
    %vm80 = vmor %vm78, %vm79
    %v81 = vsel %vm80, %v72, %v77
    %v82 = vmul.f32 %v40, %v71
    %v83 = vmul.f32 %v41, %v81
    %v84 = vld [vmem:[%s6] sm:$0x1]
    %v86 = vperm.slane %v84, 0
    %v88 = vmul.f32 %v82, %v86
    %v89 = vmul.f32 %v83, %v86
    %v90 = vpack.c.bf16 %v88, %v88
    %v91 = vpack.c.bf16 %v89, %v89
    %v92 = vld [vmem:[%s1] sm:$0xf]
    %v93 = vld [vmem:[%s1 + $0x4] sm:$0xf]
    %v94 = vld [vmem:[%s1 + $0x8] sm:$0xf]
    %v95 = vld [vmem:[%s1 + $0xc] sm:$0xf]
    %v96 = vld [vmem:[%s1 + $0x10] sm:$0xf]
    %v97 = vld [vmem:[%s1 + $0x14] sm:$0xf]
    %v98 = vld [vmem:[%s1 + $0x18] sm:$0xf]
    %v99 = vld [vmem:[%s1 + $0x1c] sm:$0xf]
    %v100 = vld [vmem:[%s1 + $0x20] sm:$0xf]
    %v101 = vld [vmem:[%s1 + $0x24] sm:$0xf]
    %v102 = vld [vmem:[%s1 + $0x28] sm:$0xf]
    %v103 = vld [vmem:[%s1 + $0x2c] sm:$0xf]
    %v104 = vld [vmem:[%s1 + $0x30] sm:$0xf]
    %v105 = vld [vmem:[%s1 + $0x34] sm:$0xf]
    %v106 = vld [vmem:[%s1 + $0x38] sm:$0xf]
    %v107 = vld [vmem:[%s1 + $0x3c] sm:$0xf]
    %v108 = vld [vmem:[%s1 + $0x40] sm:$0xf]
    %v109 = vld [vmem:[%s1 + $0x44] sm:$0xf]
    %v110 = vld [vmem:[%s1 + $0x48] sm:$0xf]
    %v111 = vld [vmem:[%s1 + $0x4c] sm:$0xf]
    %v112 = vld [vmem:[%s1 + $0x50] sm:$0xf]
    %v113 = vld [vmem:[%s1 + $0x54] sm:$0xf]
    %v114 = vld [vmem:[%s1 + $0x58] sm:$0xf]
    %v115 = vld [vmem:[%s1 + $0x5c] sm:$0xf]
    %v116 = vld [vmem:[%s1 + $0x60] sm:$0xf]
    %v117 = vld [vmem:[%s1 + $0x64] sm:$0xf]
    %v118 = vld [vmem:[%s1 + $0x68] sm:$0xf]
    %v119 = vld [vmem:[%s1 + $0x6c] sm:$0xf]
    %v120 = vld [vmem:[%s1 + $0x70] sm:$0xf]
    %v121 = vld [vmem:[%s1 + $0x74] sm:$0xf]
    %v122 = vld [vmem:[%s1 + $0x78] sm:$0xf]
    %v123 = vld [vmem:[%s1 + $0x7c] sm:$0xf]
    %v124 = vld [vmem:[%s1 + $0x80] sm:$0xf]
    %v125 = vld [vmem:[%s1 + $0x84] sm:$0xf]
    %v126 = vld [vmem:[%s1 + $0x88] sm:$0xf]
    %v127 = vld [vmem:[%s1 + $0x8c] sm:$0xf]
    %v128 = vld [vmem:[%s1 + $0x90] sm:$0xf]
    %v129 = vld [vmem:[%s1 + $0x94] sm:$0xf]
    %v130 = vld [vmem:[%s1 + $0x98] sm:$0xf]
    %v131 = vld [vmem:[%s1 + $0x9c] sm:$0xf]
    %v132 = vld [vmem:[%s1 + $0xa0] sm:$0xf]
    %v133 = vld [vmem:[%s1 + $0xa4] sm:$0xf]
    %v134 = vld [vmem:[%s1 + $0xa8] sm:$0xf]
    %v135 = vld [vmem:[%s1 + $0xac] sm:$0xf]
    %v136 = vld [vmem:[%s1 + $0xb0] sm:$0xf]
    %v137 = vld [vmem:[%s1 + $0xb4] sm:$0xf]
    %v138 = vld [vmem:[%s1 + $0xb8] sm:$0xf]
    %v139 = vld [vmem:[%s1 + $0xbc] sm:$0xf]
    %v140 = vld [vmem:[%s1 + $0xc0] sm:$0xf]
    %v141 = vld [vmem:[%s1 + $0xc4] sm:$0xf]
    %v142 = vld [vmem:[%s1 + $0xc8] sm:$0xf]
    %v143 = vld [vmem:[%s1 + $0xcc] sm:$0xf]
    %v144 = vld [vmem:[%s1 + $0xd0] sm:$0xf]
    %v145 = vld [vmem:[%s1 + $0xd4] sm:$0xf]
    %v146 = vld [vmem:[%s1 + $0xd8] sm:$0xf]
    %v147 = vld [vmem:[%s1 + $0xdc] sm:$0xf]
    %v148 = vld [vmem:[%s1 + $0xe0] sm:$0xf]
    %v149 = vld [vmem:[%s1 + $0xe4] sm:$0xf]
    %v150 = vld [vmem:[%s1 + $0xe8] sm:$0xf]
    %v151 = vld [vmem:[%s1 + $0xec] sm:$0xf]
    %v152 = vld [vmem:[%s1 + $0xf0] sm:$0xf]
    %v153 = vld [vmem:[%s1 + $0xf4] sm:$0xf]
    %v154 = vld [vmem:[%s1 + $0xf8] sm:$0xf]
    %v155 = vld [vmem:[%s1 + $0xfc] sm:$0xf]
    %v156 = vld [vmem:[%s1 + $0x100] sm:$0xf]
    %v157 = vld [vmem:[%s1 + $0x104] sm:$0xf]
    %v158 = vld [vmem:[%s1 + $0x108] sm:$0xf]
    %v159 = vld [vmem:[%s1 + $0x10c] sm:$0xf]
    %v160 = vld [vmem:[%s1 + $0x110] sm:$0xf]
    %v161 = vld [vmem:[%s1 + $0x114] sm:$0xf]
    %v162 = vld [vmem:[%s1 + $0x118] sm:$0xf]
    %v163 = vld [vmem:[%s1 + $0x11c] sm:$0xf]
    %v164 = vld [vmem:[%s1 + $0x120] sm:$0xf]
    %v165 = vld [vmem:[%s1 + $0x124] sm:$0xf]
    %v166 = vld [vmem:[%s1 + $0x128] sm:$0xf]
    %v167 = vld [vmem:[%s1 + $0x12c] sm:$0xf]
    %v168 = vld [vmem:[%s1 + $0x130] sm:$0xf]
    %v169 = vld [vmem:[%s1 + $0x134] sm:$0xf]
    %v170 = vld [vmem:[%s1 + $0x138] sm:$0xf]
    %v171 = vld [vmem:[%s1 + $0x13c] sm:$0xf]
    %v172 = vld [vmem:[%s1 + $0x140] sm:$0xf]
    %v173 = vld [vmem:[%s1 + $0x144] sm:$0xf]
    %v174 = vld [vmem:[%s1 + $0x148] sm:$0xf]
    %v175 = vld [vmem:[%s1 + $0x14c] sm:$0xf]
    %v176 = vld [vmem:[%s1 + $0x150] sm:$0xf]
    %v177 = vld [vmem:[%s1 + $0x154] sm:$0xf]
    %v178 = vld [vmem:[%s1 + $0x158] sm:$0xf]
    %v179 = vld [vmem:[%s1 + $0x15c] sm:$0xf]
    %v180 = vld [vmem:[%s1 + $0x160] sm:$0xf]
    %v181 = vld [vmem:[%s1 + $0x164] sm:$0xf]
    %v182 = vld [vmem:[%s1 + $0x168] sm:$0xf]
    %v183 = vld [vmem:[%s1 + $0x16c] sm:$0xf]
    %v184 = vld [vmem:[%s1 + $0x170] sm:$0xf]
    %v185 = vld [vmem:[%s1 + $0x174] sm:$0xf]
    %v186 = vld [vmem:[%s1 + $0x178] sm:$0xf]
    %v187 = vld [vmem:[%s1 + $0x17c] sm:$0xf]
    %v190 = vunpack.c.l.b16 %v90
    %v191 = vunpack.c.l.b16 %v91
    %v192 = vpack.c.b16 %v191, %v190
    %v201 = vunpack.c.l.b16 %v92
    %v202 = vunpack.c.l.b16 %v93
    %v203 = vunpack.c.l.b16 %v94
    %v204 = vunpack.c.l.b16 %v95
    %v205 = vunpack.c.l.b16 %v96
    %v206 = vunpack.c.l.b16 %v97
    %v207 = vunpack.c.l.b16 %v98
    %v208 = vunpack.c.l.b16 %v99
    %v209 = vpack.c.b16 %v202, %v201
    %v210 = vpack.c.b16 %v204, %v203
    %v211 = vpack.c.b16 %v206, %v205
    %v212 = vpack.c.b16 %v208, %v207
    %v218 = vsel %vm44, %v192, 0
    %220 = vmatpush.bf16.msra.mxu0 0
    %221 = vmatpush.bf16.msra.mxu0 0
    %222 = vmatpush.bf16.msra.mxu0 0
    %223 = vmatpush.bf16.msra.mxu0 0
    %224 = vmatpush.bf16.msra.mxu0 %v212
    %225 = vmatpush.bf16.msra.mxu0 %v211
    %226 = vmatpush.bf16.msra.mxu0 %v210
    %227 = vmatpush.bf16.msra.mxu0 %v209
    %228 = vmatmul.bf16.gmra.mxu0 %v218
    %v229 = vpop.f32.mrf.mxu0
    %v230 = vadd.f32 0.0, %v229
    %v231 = vpop.f32.mrf.mxu0
    %v232 = vadd.f32 0.0, %v231
    %233 = vdwg.mxu0
    %v242 = vunpack.c.l.b16 %v100
    %v243 = vunpack.c.l.b16 %v101
    %v244 = vunpack.c.l.b16 %v102
    %v245 = vunpack.c.l.b16 %v103
    %v246 = vunpack.c.l.b16 %v104
    %v247 = vunpack.c.l.b16 %v105
    %v248 = vunpack.c.l.b16 %v106
    %v249 = vunpack.c.l.b16 %v107
    %v250 = vpack.c.b16 %v243, %v242
    %v251 = vpack.c.b16 %v245, %v244
    %v252 = vpack.c.b16 %v247, %v246
    %v253 = vpack.c.b16 %v249, %v248
    %258 = vmatpush.bf16.msra.mxu0 0
    %259 = vmatpush.bf16.msra.mxu0 0
    %260 = vmatpush.bf16.msra.mxu0 0
    %261 = vmatpush.bf16.msra.mxu0 0
    %262 = vmatpush.bf16.msra.mxu0 %v253
    %263 = vmatpush.bf16.msra.mxu0 %v252
    %264 = vmatpush.bf16.msra.mxu0 %v251
    %265 = vmatpush.bf16.msra.mxu0 %v250
    %266 = vmatmul.bf16.gmra.mxu0 %v218
    %v267 = vpop.f32.mrf.mxu0
    %v268 = vadd.f32 0.0, %v267
    %v269 = vpop.f32.mrf.mxu0
    %v270 = vadd.f32 0.0, %v269
    %271 = vdwg.mxu0
    %v280 = vunpack.c.l.b16 %v108
    %v281 = vunpack.c.l.b16 %v109
    %v282 = vunpack.c.l.b16 %v110
    %v283 = vunpack.c.l.b16 %v111
    %v284 = vunpack.c.l.b16 %v112
    %v285 = vunpack.c.l.b16 %v113
    %v286 = vunpack.c.l.b16 %v114
    %v287 = vunpack.c.l.b16 %v115
    %v288 = vpack.c.b16 %v281, %v280
    %v289 = vpack.c.b16 %v283, %v282
    %v290 = vpack.c.b16 %v285, %v284
    %v291 = vpack.c.b16 %v287, %v286
    %296 = vmatpush.bf16.msra.mxu0 0
    %297 = vmatpush.bf16.msra.mxu0 0
    %298 = vmatpush.bf16.msra.mxu0 0
    %299 = vmatpush.bf16.msra.mxu0 0
    %300 = vmatpush.bf16.msra.mxu0 %v291
    %301 = vmatpush.bf16.msra.mxu0 %v290
    %302 = vmatpush.bf16.msra.mxu0 %v289
    %303 = vmatpush.bf16.msra.mxu0 %v288
    %304 = vmatmul.bf16.gmra.mxu0 %v218
    %v305 = vpop.f32.mrf.mxu0
    %v306 = vadd.f32 0.0, %v305
    %v307 = vpop.f32.mrf.mxu0
    %v308 = vadd.f32 0.0, %v307
    %309 = vdwg.mxu0
    %v318 = vunpack.c.l.b16 %v116
    %v319 = vunpack.c.l.b16 %v117
    %v320 = vunpack.c.l.b16 %v118
    %v321 = vunpack.c.l.b16 %v119
    %v322 = vunpack.c.l.b16 %v120
    %v323 = vunpack.c.l.b16 %v121
    %v324 = vunpack.c.l.b16 %v122
    %v325 = vunpack.c.l.b16 %v123
    %v326 = vpack.c.b16 %v319, %v318
    %v327 = vpack.c.b16 %v321, %v320
    %v328 = vpack.c.b16 %v323, %v322
    %v329 = vpack.c.b16 %v325, %v324
    %334 = vmatpush.bf16.msra.mxu0 0
    %335 = vmatpush.bf16.msra.mxu0 0
    %336 = vmatpush.bf16.msra.mxu0 0
    %337 = vmatpush.bf16.msra.mxu0 0
    %338 = vmatpush.bf16.msra.mxu0 %v329
    %339 = vmatpush.bf16.msra.mxu0 %v328
    %340 = vmatpush.bf16.msra.mxu0 %v327
    %341 = vmatpush.bf16.msra.mxu0 %v326
    %342 = vmatmul.bf16.gmra.mxu0 %v218
    %v343 = vpop.f32.mrf.mxu0
    %v344 = vadd.f32 0.0, %v343
    %v345 = vpop.f32.mrf.mxu0
    %v346 = vadd.f32 0.0, %v345
    %347 = vdwg.mxu0
    %v356 = vunpack.c.l.b16 %v124
    %v357 = vunpack.c.l.b16 %v125
    %v358 = vunpack.c.l.b16 %v126
    %v359 = vunpack.c.l.b16 %v127
    %v360 = vunpack.c.l.b16 %v128
    %v361 = vunpack.c.l.b16 %v129
    %v362 = vunpack.c.l.b16 %v130
    %v363 = vunpack.c.l.b16 %v131
    %v364 = vpack.c.b16 %v357, %v356
    %v365 = vpack.c.b16 %v359, %v358
    %v366 = vpack.c.b16 %v361, %v360
    %v367 = vpack.c.b16 %v363, %v362
    %372 = vmatpush.bf16.msra.mxu0 0
    %373 = vmatpush.bf16.msra.mxu0 0
    %374 = vmatpush.bf16.msra.mxu0 0
    %375 = vmatpush.bf16.msra.mxu0 0
    %376 = vmatpush.bf16.msra.mxu0 %v367
    %377 = vmatpush.bf16.msra.mxu0 %v366
    %378 = vmatpush.bf16.msra.mxu0 %v365
    %379 = vmatpush.bf16.msra.mxu0 %v364
    %380 = vmatmul.bf16.gmra.mxu0 %v218
    %v381 = vpop.f32.mrf.mxu0
    %v382 = vadd.f32 0.0, %v381
    %v383 = vpop.f32.mrf.mxu0
    %v384 = vadd.f32 0.0, %v383
    %385 = vdwg.mxu0
    %v394 = vunpack.c.l.b16 %v132
    %v395 = vunpack.c.l.b16 %v133
    %v396 = vunpack.c.l.b16 %v134
    %v397 = vunpack.c.l.b16 %v135
    %v398 = vunpack.c.l.b16 %v136
    %v399 = vunpack.c.l.b16 %v137
    %v400 = vunpack.c.l.b16 %v138
    %v401 = vunpack.c.l.b16 %v139
    %v402 = vpack.c.b16 %v395, %v394
    %v403 = vpack.c.b16 %v397, %v396
    %v404 = vpack.c.b16 %v399, %v398
    %v405 = vpack.c.b16 %v401, %v400
    %410 = vmatpush.bf16.msra.mxu0 0
    %411 = vmatpush.bf16.msra.mxu0 0
    %412 = vmatpush.bf16.msra.mxu0 0
    %413 = vmatpush.bf16.msra.mxu0 0
    %414 = vmatpush.bf16.msra.mxu0 %v405
    %415 = vmatpush.bf16.msra.mxu0 %v404
    %416 = vmatpush.bf16.msra.mxu0 %v403
    %417 = vmatpush.bf16.msra.mxu0 %v402
    %418 = vmatmul.bf16.gmra.mxu0 %v218
    %v419 = vpop.f32.mrf.mxu0
    %v420 = vadd.f32 0.0, %v419
    %v421 = vpop.f32.mrf.mxu0
    %v422 = vadd.f32 0.0, %v421
    %423 = vdwg.mxu0
    %v432 = vunpack.c.l.b16 %v140
    %v433 = vunpack.c.l.b16 %v141
    %v434 = vunpack.c.l.b16 %v142
    %v435 = vunpack.c.l.b16 %v143
    %v436 = vunpack.c.l.b16 %v144
    %v437 = vunpack.c.l.b16 %v145
    %v438 = vunpack.c.l.b16 %v146
    %v439 = vunpack.c.l.b16 %v147
    %v440 = vpack.c.b16 %v433, %v432
    %v441 = vpack.c.b16 %v435, %v434
    %v442 = vpack.c.b16 %v437, %v436
    %v443 = vpack.c.b16 %v439, %v438
    %448 = vmatpush.bf16.msra.mxu0 0
    %449 = vmatpush.bf16.msra.mxu0 0
    %450 = vmatpush.bf16.msra.mxu0 0
    %451 = vmatpush.bf16.msra.mxu0 0
    %452 = vmatpush.bf16.msra.mxu0 %v443
    %453 = vmatpush.bf16.msra.mxu0 %v442
    %454 = vmatpush.bf16.msra.mxu0 %v441
    %455 = vmatpush.bf16.msra.mxu0 %v440
    %456 = vmatmul.bf16.gmra.mxu0 %v218
    %v457 = vpop.f32.mrf.mxu0
    %v458 = vadd.f32 0.0, %v457
    %v459 = vpop.f32.mrf.mxu0
    %v460 = vadd.f32 0.0, %v459
    %461 = vdwg.mxu0
    %v470 = vunpack.c.l.b16 %v148
    %v471 = vunpack.c.l.b16 %v149
    %v472 = vunpack.c.l.b16 %v150
    %v473 = vunpack.c.l.b16 %v151
    %v474 = vunpack.c.l.b16 %v152
    %v475 = vunpack.c.l.b16 %v153
    %v476 = vunpack.c.l.b16 %v154
    %v477 = vunpack.c.l.b16 %v155
    %v478 = vpack.c.b16 %v471, %v470
    %v479 = vpack.c.b16 %v473, %v472
    %v480 = vpack.c.b16 %v475, %v474
    %v481 = vpack.c.b16 %v477, %v476
    %486 = vmatpush.bf16.msra.mxu0 0
    %487 = vmatpush.bf16.msra.mxu0 0
    %488 = vmatpush.bf16.msra.mxu0 0
    %489 = vmatpush.bf16.msra.mxu0 0
    %490 = vmatpush.bf16.msra.mxu0 %v481
    %491 = vmatpush.bf16.msra.mxu0 %v480
    %492 = vmatpush.bf16.msra.mxu0 %v479
    %493 = vmatpush.bf16.msra.mxu0 %v478
    %494 = vmatmul.bf16.gmra.mxu0 %v218
    %v495 = vpop.f32.mrf.mxu0
    %v496 = vadd.f32 0.0, %v495
    %v497 = vpop.f32.mrf.mxu0
    %v498 = vadd.f32 0.0, %v497
    %499 = vdwg.mxu0
    %v508 = vunpack.c.l.b16 %v156
    %v509 = vunpack.c.l.b16 %v157
    %v510 = vunpack.c.l.b16 %v158
    %v511 = vunpack.c.l.b16 %v159
    %v512 = vunpack.c.l.b16 %v160
    %v513 = vunpack.c.l.b16 %v161
    %v514 = vunpack.c.l.b16 %v162
    %v515 = vunpack.c.l.b16 %v163
    %v516 = vpack.c.b16 %v509, %v508
    %v517 = vpack.c.b16 %v511, %v510
    %v518 = vpack.c.b16 %v513, %v512
    %v519 = vpack.c.b16 %v515, %v514
    %524 = vmatpush.bf16.msra.mxu0 0
    %525 = vmatpush.bf16.msra.mxu0 0
    %526 = vmatpush.bf16.msra.mxu0 0
    %527 = vmatpush.bf16.msra.mxu0 0
    %528 = vmatpush.bf16.msra.mxu0 %v519
    %529 = vmatpush.bf16.msra.mxu0 %v518
    %530 = vmatpush.bf16.msra.mxu0 %v517
    %531 = vmatpush.bf16.msra.mxu0 %v516
    %532 = vmatmul.bf16.gmra.mxu0 %v218
    %v533 = vpop.f32.mrf.mxu0
    %v534 = vadd.f32 0.0, %v533
    %v535 = vpop.f32.mrf.mxu0
    %v536 = vadd.f32 0.0, %v535
    %537 = vdwg.mxu0
    %v546 = vunpack.c.l.b16 %v164
    %v547 = vunpack.c.l.b16 %v165
    %v548 = vunpack.c.l.b16 %v166
    %v549 = vunpack.c.l.b16 %v167
    %v550 = vunpack.c.l.b16 %v168
    %v551 = vunpack.c.l.b16 %v169
    %v552 = vunpack.c.l.b16 %v170
    %v553 = vunpack.c.l.b16 %v171
    %v554 = vpack.c.b16 %v547, %v546
    %v555 = vpack.c.b16 %v549, %v548
    %v556 = vpack.c.b16 %v551, %v550
    %v557 = vpack.c.b16 %v553, %v552
    %562 = vmatpush.bf16.msra.mxu0 0
    %563 = vmatpush.bf16.msra.mxu0 0
    %564 = vmatpush.bf16.msra.mxu0 0
    %565 = vmatpush.bf16.msra.mxu0 0
    %566 = vmatpush.bf16.msra.mxu0 %v557
    %567 = vmatpush.bf16.msra.mxu0 %v556
    %568 = vmatpush.bf16.msra.mxu0 %v555
    %569 = vmatpush.bf16.msra.mxu0 %v554
    %570 = vmatmul.bf16.gmra.mxu0 %v218
    %v571 = vpop.f32.mrf.mxu0
    %v572 = vadd.f32 0.0, %v571
    %v573 = vpop.f32.mrf.mxu0
    %v574 = vadd.f32 0.0, %v573
    %575 = vdwg.mxu0
    %v584 = vunpack.c.l.b16 %v172
    %v585 = vunpack.c.l.b16 %v173
    %v586 = vunpack.c.l.b16 %v174
    %v587 = vunpack.c.l.b16 %v175
    %v588 = vunpack.c.l.b16 %v176
    %v589 = vunpack.c.l.b16 %v177
    %v590 = vunpack.c.l.b16 %v178
    %v591 = vunpack.c.l.b16 %v179
    %v592 = vpack.c.b16 %v585, %v584
    %v593 = vpack.c.b16 %v587, %v586
    %v594 = vpack.c.b16 %v589, %v588
    %v595 = vpack.c.b16 %v591, %v590
    %600 = vmatpush.bf16.msra.mxu0 0
    %601 = vmatpush.bf16.msra.mxu0 0
    %602 = vmatpush.bf16.msra.mxu0 0
    %603 = vmatpush.bf16.msra.mxu0 0
    %604 = vmatpush.bf16.msra.mxu0 %v595
    %605 = vmatpush.bf16.msra.mxu0 %v594
    %606 = vmatpush.bf16.msra.mxu0 %v593
    %607 = vmatpush.bf16.msra.mxu0 %v592
    %608 = vmatmul.bf16.gmra.mxu0 %v218
    %v609 = vpop.f32.mrf.mxu0
    %v610 = vadd.f32 0.0, %v609
    %v611 = vpop.f32.mrf.mxu0
    %v612 = vadd.f32 0.0, %v611
    %613 = vdwg.mxu0
    %v622 = vunpack.c.l.b16 %v180
    %v623 = vunpack.c.l.b16 %v181
    %v624 = vunpack.c.l.b16 %v182
    %v625 = vunpack.c.l.b16 %v183
    %v626 = vunpack.c.l.b16 %v184
    %v627 = vunpack.c.l.b16 %v185
    %v628 = vunpack.c.l.b16 %v186
    %v629 = vunpack.c.l.b16 %v187
    %v630 = vpack.c.b16 %v623, %v622
    %v631 = vpack.c.b16 %v625, %v624
    %v632 = vpack.c.b16 %v627, %v626
    %v633 = vpack.c.b16 %v629, %v628
    %638 = vmatpush.bf16.msra.mxu0 0
    %639 = vmatpush.bf16.msra.mxu0 0
    %640 = vmatpush.bf16.msra.mxu0 0
    %641 = vmatpush.bf16.msra.mxu0 0
    %642 = vmatpush.bf16.msra.mxu0 %v633
    %643 = vmatpush.bf16.msra.mxu0 %v632
    %644 = vmatpush.bf16.msra.mxu0 %v631
    %645 = vmatpush.bf16.msra.mxu0 %v630
    %646 = vmatmul.bf16.gmra.mxu0 %v218
    %v647 = vpop.f32.mrf.mxu0
    %v648 = vadd.f32 0.0, %v647
    %v649 = vpop.f32.mrf.mxu0
    %v650 = vadd.f32 0.0, %v649
    %651 = vdwg.mxu0
    %v652 = vld [vmem:[%s8] sm:$0xff]
    %v653 = vld [vmem:[%s8 + $0x8] sm:$0xff]
    %v654 = vld [vmem:[%s9] sm:$0xff]
    %v655 = vld [vmem:[%s9 + $0x8] sm:$0xff]
    %v656 = vsub.f32 0.0, %v230
    %v657 = vsub.f32 0.0, %v232
    %v658 = vsub.f32 0.0, %v268
    %v659 = vsub.f32 0.0, %v270
    %v660 = vsub.f32 0.0, %v306
    %v661 = vsub.f32 0.0, %v308
    %v662 = vsub.f32 0.0, %v344
    %v663 = vsub.f32 0.0, %v346
    %672 = vrot.lane.b32.xlu0 %v656, 120
    %v673 = vpop.permute.xlu0 %672
    %674 = vrot.lane.b32.xlu0 %v657, 120
    %v675 = vpop.permute.xlu0 %674
    %676 = vrot.lane.b32.xlu0 %v658, 120
    %v677 = vpop.permute.xlu0 %676
    %678 = vrot.lane.b32.xlu0 %v659, 120
    %v679 = vpop.permute.xlu0 %678
    %680 = vrot.lane.b32.xlu0 %v660, 120
    %v681 = vpop.permute.xlu0 %680
    %682 = vrot.lane.b32.xlu0 %v661, 120
    %v683 = vpop.permute.xlu0 %682
    %684 = vrot.lane.b32.xlu0 %v662, 120
    %v685 = vpop.permute.xlu0 %684
    %686 = vrot.lane.b32.xlu0 %v663, 120
    %v687 = vpop.permute.xlu0 %686
    %704 = vrot.lane.b32.xlu0 %v230, 8
    %v705 = vpop.permute.xlu0 %704
    %706 = vrot.lane.b32.xlu0 %v232, 8
    %v707 = vpop.permute.xlu0 %706
    %708 = vrot.lane.b32.xlu0 %v268, 8
    %v709 = vpop.permute.xlu0 %708
    %710 = vrot.lane.b32.xlu0 %v270, 8
    %v711 = vpop.permute.xlu0 %710
    %712 = vrot.lane.b32.xlu0 %v306, 8
    %v713 = vpop.permute.xlu0 %712
    %714 = vrot.lane.b32.xlu0 %v308, 8
    %v715 = vpop.permute.xlu0 %714
    %716 = vrot.lane.b32.xlu0 %v344, 8
    %v717 = vpop.permute.xlu0 %716
    %718 = vrot.lane.b32.xlu0 %v346, 8
    %v719 = vpop.permute.xlu0 %718
    %vm728 = vcmask 64512
    %v729 = vsel %vm728, %v673, %v705
    %v730 = vsel %vm728, %v675, %v707
    %v731 = vsel %vm728, %v677, %v709
    %v732 = vsel %vm728, %v679, %v711
    %v733 = vsel %vm728, %v681, %v713
    %v734 = vsel %vm728, %v683, %v715
    %v735 = vsel %vm728, %v685, %v717
    %v736 = vsel %vm728, %v687, %v719
    %v737 = vmul.f32 %v230, %v652
    %v738 = vmul.f32 %v232, %v653
    %v739 = vmul.f32 %v268, %v652
    %v740 = vmul.f32 %v270, %v653
    %v741 = vmul.f32 %v306, %v652
    %v742 = vmul.f32 %v308, %v653
    %v743 = vmul.f32 %v344, %v652
    %v744 = vmul.f32 %v346, %v653
    %v745 = vmul.f32 %v729, %v654
    %v746 = vmul.f32 %v730, %v655
    %v747 = vmul.f32 %v731, %v654
    %v748 = vmul.f32 %v732, %v655
    %v749 = vmul.f32 %v733, %v654
    %v750 = vmul.f32 %v734, %v655
    %v751 = vmul.f32 %v735, %v654
    %v752 = vmul.f32 %v736, %v655
    %v753 = vadd.f32 %v737, %v745
    %v754 = vadd.f32 %v738, %v746
    %v755 = vadd.f32 %v739, %v747
    %v756 = vadd.f32 %v740, %v748
    %v757 = vadd.f32 %v741, %v749
    %v758 = vadd.f32 %v742, %v750
    %v759 = vadd.f32 %v743, %v751
    %v760 = vadd.f32 %v744, %v752
    %v761 = vmul.f32 %v753, 0.25
    %v762 = vmul.f32 %v754, 0.25
    %v763 = vmul.f32 %v755, 0.25
    %v764 = vmul.f32 %v756, 0.25
    %v765 = vmul.f32 %v757, 0.25
    %v766 = vmul.f32 %v758, 0.25
    %v767 = vmul.f32 %v759, 0.25
    %v768 = vmul.f32 %v760, 0.25
    %v769 = vsub.f32 0.0, %v382
    %v770 = vsub.f32 0.0, %v384
    %v771 = vsub.f32 0.0, %v420
    %v772 = vsub.f32 0.0, %v422
    %v773 = vsub.f32 0.0, %v458
    %v774 = vsub.f32 0.0, %v460
    %v775 = vsub.f32 0.0, %v496
    %v776 = vsub.f32 0.0, %v498
    %785 = vrot.lane.b32.xlu0 %v769, 120
    %v786 = vpop.permute.xlu0 %785
    %787 = vrot.lane.b32.xlu0 %v770, 120
    %v788 = vpop.permute.xlu0 %787
    %789 = vrot.lane.b32.xlu0 %v771, 120
    %v790 = vpop.permute.xlu0 %789
    %791 = vrot.lane.b32.xlu0 %v772, 120
    %v792 = vpop.permute.xlu0 %791
    %793 = vrot.lane.b32.xlu0 %v773, 120
    %v794 = vpop.permute.xlu0 %793
    %795 = vrot.lane.b32.xlu0 %v774, 120
    %v796 = vpop.permute.xlu0 %795
    %797 = vrot.lane.b32.xlu0 %v775, 120
    %v798 = vpop.permute.xlu0 %797
    %799 = vrot.lane.b32.xlu0 %v776, 120
    %v800 = vpop.permute.xlu0 %799
    %817 = vrot.lane.b32.xlu0 %v382, 8
    %v818 = vpop.permute.xlu0 %817
    %819 = vrot.lane.b32.xlu0 %v384, 8
    %v820 = vpop.permute.xlu0 %819
    %821 = vrot.lane.b32.xlu0 %v420, 8
    %v822 = vpop.permute.xlu0 %821
    %823 = vrot.lane.b32.xlu0 %v422, 8
    %v824 = vpop.permute.xlu0 %823
    %825 = vrot.lane.b32.xlu0 %v458, 8
    %v826 = vpop.permute.xlu0 %825
    %827 = vrot.lane.b32.xlu0 %v460, 8
    %v828 = vpop.permute.xlu0 %827
    %829 = vrot.lane.b32.xlu0 %v496, 8
    %v830 = vpop.permute.xlu0 %829
    %831 = vrot.lane.b32.xlu0 %v498, 8
    %v832 = vpop.permute.xlu0 %831
    %v841 = vsel %vm728, %v786, %v818
    %v842 = vsel %vm728, %v788, %v820
    %v843 = vsel %vm728, %v790, %v822
    %v844 = vsel %vm728, %v792, %v824
    %v845 = vsel %vm728, %v794, %v826
    %v846 = vsel %vm728, %v796, %v828
    %v847 = vsel %vm728, %v798, %v830
    %v848 = vsel %vm728, %v800, %v832
    %v849 = vmul.f32 %v382, %v652
    %v850 = vmul.f32 %v384, %v653
    %v851 = vmul.f32 %v420, %v652
    %v852 = vmul.f32 %v422, %v653
    %v853 = vmul.f32 %v458, %v652
    %v854 = vmul.f32 %v460, %v653
    %v855 = vmul.f32 %v496, %v652
    %v856 = vmul.f32 %v498, %v653
    %v857 = vmul.f32 %v841, %v654
    %v858 = vmul.f32 %v842, %v655
    %v859 = vmul.f32 %v843, %v654
    %v860 = vmul.f32 %v844, %v655
    %v861 = vmul.f32 %v845, %v654
    %v862 = vmul.f32 %v846, %v655
    %v863 = vmul.f32 %v847, %v654
    %v864 = vmul.f32 %v848, %v655
    %v865 = vadd.f32 %v849, %v857
    %v866 = vadd.f32 %v850, %v858
    %v867 = vadd.f32 %v851, %v859
    %v868 = vadd.f32 %v852, %v860
    %v869 = vadd.f32 %v853, %v861
    %v870 = vadd.f32 %v854, %v862
    %v871 = vadd.f32 %v855, %v863
    %v872 = vadd.f32 %v856, %v864
    %v873 = vpack.c.bf16 %v761, %v761
    %v874 = vpack.c.bf16 %v762, %v762
    %v875 = vpack.c.bf16 %v763, %v763
    %v876 = vpack.c.bf16 %v764, %v764
    %v877 = vpack.c.bf16 %v765, %v765
    %v878 = vpack.c.bf16 %v766, %v766
    %v879 = vpack.c.bf16 %v767, %v767
    %v880 = vpack.c.bf16 %v768, %v768
    %v881 = vpack.c.bf16 %v865, %v865
    %v882 = vpack.c.bf16 %v866, %v866
    %v883 = vpack.c.bf16 %v867, %v867
    %v884 = vpack.c.bf16 %v868, %v868
    %v885 = vpack.c.bf16 %v869, %v869
    %v886 = vpack.c.bf16 %v870, %v870
    %v887 = vpack.c.bf16 %v871, %v871
    %v888 = vpack.c.bf16 %v872, %v872
    %v889 = vld [vmem:[%s10] sm:$0xff]
    %v890 = vld [vmem:[%s10 + $0x8] sm:$0xff]
    %v893 = vunpack.c.l.b16 %v873
    %v894 = vunpack.c.l.b16 %v874
    %v895 = vpack.c.b16 %v894, %v893
    %v898 = vunpack.c.l.b16 %v881
    %v899 = vunpack.c.l.b16 %v882
    %v900 = vpack.c.b16 %v899, %v898
    %vm901 = vcmask 130048
    %v903 = vsel %vm901, %v895, 0
    %v906 = vsel %vm901, %v900, 0
    %908 = vmatpush.bf16.xpose.msra.mxu0 0
    %909 = vmatpush.bf16.xpose.msra.mxu0 0
    %910 = vmatpush.bf16.xpose.msra.mxu0 0
    %911 = vmatpush.bf16.xpose.msra.mxu0 0
    %912 = vmatpush.bf16.xpose.msra.mxu0 0
    %913 = vmatpush.bf16.xpose.msra.mxu0 0
    %914 = vmatpush.bf16.xpose.msra.mxu0 0
    %915 = vmatpush.bf16.xpose.msra.mxu0 %v906
    %916 = vmatmul.bf16.gmra.mxu0 %v903
    %v917 = vpop.f32.mrf.mxu0
    %v918 = vadd.f32 %v889, %v917
    %v919 = vpop.f32.mrf.mxu0
    %v920 = vadd.f32 %v890, %v919
    %921 = vdwg.mxu0
    %v924 = vunpack.c.l.b16 %v875
    %v925 = vunpack.c.l.b16 %v876
    %v926 = vpack.c.b16 %v925, %v924
    %v929 = vunpack.c.l.b16 %v883
    %v930 = vunpack.c.l.b16 %v884
    %v931 = vpack.c.b16 %v930, %v929
    %v933 = vsel %vm901, %v926, 0
    %v936 = vsel %vm901, %v931, 0
    %938 = vmatpush.bf16.xpose.msra.mxu0 0
    %939 = vmatpush.bf16.xpose.msra.mxu0 0
    %940 = vmatpush.bf16.xpose.msra.mxu0 0
    %941 = vmatpush.bf16.xpose.msra.mxu0 0
    %942 = vmatpush.bf16.xpose.msra.mxu0 0
    %943 = vmatpush.bf16.xpose.msra.mxu0 0
    %944 = vmatpush.bf16.xpose.msra.mxu0 0
    %945 = vmatpush.bf16.xpose.msra.mxu0 %v936
    %946 = vmatmul.bf16.gmra.mxu0 %v933
    %v947 = vpop.f32.mrf.mxu0
    %v948 = vadd.f32 %v889, %v947
    %v949 = vpop.f32.mrf.mxu0
    %v950 = vadd.f32 %v890, %v949
    %951 = vdwg.mxu0
    %v954 = vunpack.c.l.b16 %v877
    %v955 = vunpack.c.l.b16 %v878
    %v956 = vpack.c.b16 %v955, %v954
    %v959 = vunpack.c.l.b16 %v885
    %v960 = vunpack.c.l.b16 %v886
    %v961 = vpack.c.b16 %v960, %v959
    %v963 = vsel %vm901, %v956, 0
    %v966 = vsel %vm901, %v961, 0
    %968 = vmatpush.bf16.xpose.msra.mxu0 0
    %969 = vmatpush.bf16.xpose.msra.mxu0 0
    %970 = vmatpush.bf16.xpose.msra.mxu0 0
    %971 = vmatpush.bf16.xpose.msra.mxu0 0
    %972 = vmatpush.bf16.xpose.msra.mxu0 0
    %973 = vmatpush.bf16.xpose.msra.mxu0 0
    %974 = vmatpush.bf16.xpose.msra.mxu0 0
    %975 = vmatpush.bf16.xpose.msra.mxu0 %v966
    %976 = vmatmul.bf16.gmra.mxu0 %v963
    %v977 = vpop.f32.mrf.mxu0
    %v978 = vadd.f32 %v889, %v977
    %v979 = vpop.f32.mrf.mxu0
    %v980 = vadd.f32 %v890, %v979
    %981 = vdwg.mxu0
    %v984 = vunpack.c.l.b16 %v879
    %v985 = vunpack.c.l.b16 %v880
    %v986 = vpack.c.b16 %v985, %v984
    %v989 = vunpack.c.l.b16 %v887
    %v990 = vunpack.c.l.b16 %v888
    %v991 = vpack.c.b16 %v990, %v989
    %v993 = vsel %vm901, %v986, 0
    %v996 = vsel %vm901, %v991, 0
    %998 = vmatpush.bf16.xpose.msra.mxu0 0
    %999 = vmatpush.bf16.xpose.msra.mxu0 0
    %1000 = vmatpush.bf16.xpose.msra.mxu0 0
    %1001 = vmatpush.bf16.xpose.msra.mxu0 0
    %1002 = vmatpush.bf16.xpose.msra.mxu0 0
    %1003 = vmatpush.bf16.xpose.msra.mxu0 0
    %1004 = vmatpush.bf16.xpose.msra.mxu0 0
    %1005 = vmatpush.bf16.xpose.msra.mxu0 %v996
    %1006 = vmatmul.bf16.gmra.mxu0 %v993
    %v1007 = vpop.f32.mrf.mxu0
    %v1008 = vadd.f32 %v889, %v1007
    %v1009 = vpop.f32.mrf.mxu0
    %v1010 = vadd.f32 %v890, %v1009
    %1011 = vdwg.mxu0
    %v1012 = vsel %vm901, %v918, -inf
    %1013 = vmax.xlane.f32.xlu0 %v1012
    %v1014 = vpop.xlane.xlu0 %1013
    %v1015 = vsel %vm901, %v920, -inf
    %1016 = vmax.xlane.f32.xlu0 %v1015
    %v1017 = vpop.xlane.xlu0 %1016
    %v1018 = vsel %vm901, %v948, -inf
    %1019 = vmax.xlane.f32.xlu0 %v1018
    %v1020 = vpop.xlane.xlu0 %1019
    %v1021 = vsel %vm901, %v950, -inf
    %1022 = vmax.xlane.f32.xlu0 %v1021
    %v1023 = vpop.xlane.xlu0 %1022
    %v1024 = vsel %vm901, %v978, -inf
    %1025 = vmax.xlane.f32.xlu0 %v1024
    %v1026 = vpop.xlane.xlu0 %1025
    %v1027 = vsel %vm901, %v980, -inf
    %1028 = vmax.xlane.f32.xlu0 %v1027
    %v1029 = vpop.xlane.xlu0 %1028
    %v1030 = vsel %vm901, %v1008, -inf
    %1031 = vmax.xlane.f32.xlu0 %v1030
    %v1032 = vpop.xlane.xlu0 %1031
    %v1033 = vsel %vm901, %v1010, -inf
    %1034 = vmax.xlane.f32.xlu0 %v1033
    %v1035 = vpop.xlane.xlu0 %1034
    %v1036 = vsub.f32 %v918, %v1014
    %v1037 = vsub.f32 %v920, %v1017
    %v1038 = vsub.f32 %v948, %v1020
    %v1039 = vsub.f32 %v950, %v1023
    %v1040 = vsub.f32 %v978, %v1026
    %v1041 = vsub.f32 %v980, %v1029
    %v1042 = vsub.f32 %v1008, %v1032
    %v1043 = vsub.f32 %v1010, %v1035
    %v1044 = vmul.f32 %v1036, 1.442695
    %v1045 = vpow.pop %v1044
    %v1046 = vmul.f32 %v1037, 1.442695
    %v1047 = vpow.pop %v1046
    %v1048 = vmul.f32 %v1038, 1.442695
    %v1049 = vpow.pop %v1048
    %v1050 = vmul.f32 %v1039, 1.442695
    %v1051 = vpow.pop %v1050
    %v1052 = vmul.f32 %v1040, 1.442695
    %v1053 = vpow.pop %v1052
    %v1054 = vmul.f32 %v1041, 1.442695
    %v1055 = vpow.pop %v1054
    %v1056 = vmul.f32 %v1042, 1.442695
    %v1057 = vpow.pop %v1056
    %v1058 = vmul.f32 %v1043, 1.442695
    %v1059 = vpow.pop %v1058
    %v1060 = vsel %vm901, %v1045, 0.0
    %1061 = vadd.xlane.f32.xlu0 %v1060
    %v1062 = vpop.xlane.xlu0 %1061
    %v1063 = vsel %vm901, %v1047, 0.0
    %1064 = vadd.xlane.f32.xlu0 %v1063
    %v1065 = vpop.xlane.xlu0 %1064
    %v1066 = vsel %vm901, %v1049, 0.0
    %1067 = vadd.xlane.f32.xlu0 %v1066
    %v1068 = vpop.xlane.xlu0 %1067
    %v1069 = vsel %vm901, %v1051, 0.0
    %1070 = vadd.xlane.f32.xlu0 %v1069
    %v1071 = vpop.xlane.xlu0 %1070
    %v1072 = vsel %vm901, %v1053, 0.0
    %1073 = vadd.xlane.f32.xlu0 %v1072
    %v1074 = vpop.xlane.xlu0 %1073
    %v1075 = vsel %vm901, %v1055, 0.0
    %1076 = vadd.xlane.f32.xlu0 %v1075
    %v1077 = vpop.xlane.xlu0 %1076
    %v1078 = vsel %vm901, %v1057, 0.0
    %1079 = vadd.xlane.f32.xlu0 %v1078
    %v1080 = vpop.xlane.xlu0 %1079
    %v1081 = vsel %vm901, %v1059, 0.0
    %1082 = vadd.xlane.f32.xlu0 %v1081
    %v1083 = vpop.xlane.xlu0 %1082
    %v1084 = vrcp.pop %v1062
    %v1085 = vrcp.pop %v1065
    %v1086 = vrcp.pop %v1068
    %v1087 = vrcp.pop %v1071
    %v1088 = vrcp.pop %v1074
    %v1089 = vrcp.pop %v1077
    %v1090 = vrcp.pop %v1080
    %v1091 = vrcp.pop %v1083
    %v1092 = vmul.f32 %v1045, %v1084
    %v1093 = vmul.f32 %v1047, %v1085
    %v1094 = vmul.f32 %v1049, %v1086
    %v1095 = vmul.f32 %v1051, %v1087
    %v1096 = vmul.f32 %v1053, %v1088
    %v1097 = vmul.f32 %v1055, %v1089
    %v1098 = vmul.f32 %v1057, %v1090
    %v1099 = vmul.f32 %v1059, %v1091
    %v1100 = vpack.c.bf16 %v1092, %v1092
    %v1101 = vpack.c.bf16 %v1093, %v1093
    %v1102 = vpack.c.bf16 %v1094, %v1094
    %v1103 = vpack.c.bf16 %v1095, %v1095
    %v1104 = vpack.c.bf16 %v1096, %v1096
    %v1105 = vpack.c.bf16 %v1097, %v1097
    %v1106 = vpack.c.bf16 %v1098, %v1098
    %v1107 = vpack.c.bf16 %v1099, %v1099
    %v1108 = vpack.c.bf16 %v534, %v534
    %v1109 = vpack.c.bf16 %v536, %v536
    %v1110 = vpack.c.bf16 %v572, %v572
    %v1111 = vpack.c.bf16 %v574, %v574
    %v1112 = vpack.c.bf16 %v610, %v610
    %v1113 = vpack.c.bf16 %v612, %v612
    %v1114 = vpack.c.bf16 %v648, %v648
    %v1115 = vpack.c.bf16 %v650, %v650
    %v1118 = vunpack.c.l.b16 %v1100
    %v1119 = vunpack.c.l.b16 %v1101
    %v1120 = vpack.c.b16 %v1119, %v1118
    %v1123 = vunpack.c.l.b16 %v1108
    %v1124 = vunpack.c.l.b16 %v1109
    %v1125 = vpack.c.b16 %v1124, %v1123
    %v1128 = vsel %vm901, %v1120, 0
    %1130 = vmatpush.bf16.msra.mxu0 0
    %1131 = vmatpush.bf16.msra.mxu0 0
    %1132 = vmatpush.bf16.msra.mxu0 0
    %1133 = vmatpush.bf16.msra.mxu0 0
    %1134 = vmatpush.bf16.msra.mxu0 0
    %1135 = vmatpush.bf16.msra.mxu0 0
    %1136 = vmatpush.bf16.msra.mxu0 0
    %1137 = vmatpush.bf16.msra.mxu0 %v1125
    %1138 = vmatmul.bf16.gmra.mxu0 %v1128
    %v1139 = vpop.f32.mrf.mxu0
    %v1140 = vadd.f32 0.0, %v1139
    %v1141 = vpop.f32.mrf.mxu0
    %v1142 = vadd.f32 0.0, %v1141
    %1143 = vdwg.mxu0
    %v1146 = vunpack.c.l.b16 %v1102
    %v1147 = vunpack.c.l.b16 %v1103
    %v1148 = vpack.c.b16 %v1147, %v1146
    %v1151 = vunpack.c.l.b16 %v1110
    %v1152 = vunpack.c.l.b16 %v1111
    %v1153 = vpack.c.b16 %v1152, %v1151
    %v1156 = vsel %vm901, %v1148, 0
    %1158 = vmatpush.bf16.msra.mxu0 0
    %1159 = vmatpush.bf16.msra.mxu0 0
    %1160 = vmatpush.bf16.msra.mxu0 0
    %1161 = vmatpush.bf16.msra.mxu0 0
    %1162 = vmatpush.bf16.msra.mxu0 0
    %1163 = vmatpush.bf16.msra.mxu0 0
    %1164 = vmatpush.bf16.msra.mxu0 0
    %1165 = vmatpush.bf16.msra.mxu0 %v1153
    %1166 = vmatmul.bf16.gmra.mxu0 %v1156
    %v1167 = vpop.f32.mrf.mxu0
    %v1168 = vadd.f32 0.0, %v1167
    %v1169 = vpop.f32.mrf.mxu0
    %v1170 = vadd.f32 0.0, %v1169
    %1171 = vdwg.mxu0
    %v1174 = vunpack.c.l.b16 %v1104
    %v1175 = vunpack.c.l.b16 %v1105
    %v1176 = vpack.c.b16 %v1175, %v1174
    %v1179 = vunpack.c.l.b16 %v1112
    %v1180 = vunpack.c.l.b16 %v1113
    %v1181 = vpack.c.b16 %v1180, %v1179
    %v1184 = vsel %vm901, %v1176, 0
    %1186 = vmatpush.bf16.msra.mxu0 0
    %1187 = vmatpush.bf16.msra.mxu0 0
    %1188 = vmatpush.bf16.msra.mxu0 0
    %1189 = vmatpush.bf16.msra.mxu0 0
    %1190 = vmatpush.bf16.msra.mxu0 0
    %1191 = vmatpush.bf16.msra.mxu0 0
    %1192 = vmatpush.bf16.msra.mxu0 0
    %1193 = vmatpush.bf16.msra.mxu0 %v1181
    %1194 = vmatmul.bf16.gmra.mxu0 %v1184
    %v1195 = vpop.f32.mrf.mxu0
    %v1196 = vadd.f32 0.0, %v1195
    %v1197 = vpop.f32.mrf.mxu0
    %v1198 = vadd.f32 0.0, %v1197
    %1199 = vdwg.mxu0
    %v1202 = vunpack.c.l.b16 %v1106
    %v1203 = vunpack.c.l.b16 %v1107
    %v1204 = vpack.c.b16 %v1203, %v1202
    %v1207 = vunpack.c.l.b16 %v1114
    %v1208 = vunpack.c.l.b16 %v1115
    %v1209 = vpack.c.b16 %v1208, %v1207
    %v1212 = vsel %vm901, %v1204, 0
    %1214 = vmatpush.bf16.msra.mxu0 0
    %1215 = vmatpush.bf16.msra.mxu0 0
    %1216 = vmatpush.bf16.msra.mxu0 0
    %1217 = vmatpush.bf16.msra.mxu0 0
    %1218 = vmatpush.bf16.msra.mxu0 0
    %1219 = vmatpush.bf16.msra.mxu0 0
    %1220 = vmatpush.bf16.msra.mxu0 0
    %1221 = vmatpush.bf16.msra.mxu0 %v1209
    %1222 = vmatmul.bf16.gmra.mxu0 %v1212
    %v1223 = vpop.f32.mrf.mxu0
    %v1224 = vadd.f32 0.0, %v1223
    %v1225 = vpop.f32.mrf.mxu0
    %v1226 = vadd.f32 0.0, %v1225
    %1227 = vdwg.mxu0
    %1230 = vrot.lane.b32.xlu0 %v1168, 16
    %v1231 = vpop.permute.xlu0 %1230
    %1232 = vrot.lane.b32.xlu0 %v1170, 16
    %v1233 = vpop.permute.xlu0 %1232
    %1238 = vrot.lane.b32.xlu0 %v1196, 32
    %v1239 = vpop.permute.xlu0 %1238
    %1240 = vrot.lane.b32.xlu0 %v1198, 32
    %v1241 = vpop.permute.xlu0 %1240
    %1246 = vrot.lane.b32.xlu0 %v1224, 48
    %v1247 = vpop.permute.xlu0 %1246
    %1248 = vrot.lane.b32.xlu0 %v1226, 48
    %v1249 = vpop.permute.xlu0 %1248
    %v1252 = vsel %vm901, %v1140, %v1231
    %v1253 = vsel %vm901, %v1142, %v1233
    %vm1254 = vcmask 261120
    %v1255 = vsel %vm1254, %v1252, %v1239
    %v1256 = vsel %vm1254, %v1253, %v1241
    %vm1257 = vcmask 392192
    %v1258 = vsel %vm1257, %v1255, %v1247
    %v1259 = vsel %vm1257, %v1256, %v1249
    %v1260 = vpack.c.bf16 %v1259, %v1258
    %v1261 = vld [vmem:[%s2] sm:$0xf]
    %v1262 = vld [vmem:[%s2 + $0x4] sm:$0xf]
    %v1263 = vld [vmem:[%s2 + $0x8] sm:$0xf]
    %v1264 = vld [vmem:[%s2 + $0xc] sm:$0xf]
    %v1265 = vld [vmem:[%s2 + $0x10] sm:$0xf]
    %v1266 = vld [vmem:[%s2 + $0x14] sm:$0xf]
    %v1267 = vld [vmem:[%s2 + $0x18] sm:$0xf]
    %v1268 = vld [vmem:[%s2 + $0x1c] sm:$0xf]
    %v1277 = vunpack.c.l.b16 %v1261
    %v1278 = vunpack.c.l.b16 %v1262
    %v1279 = vunpack.c.l.b16 %v1263
    %v1280 = vunpack.c.l.b16 %v1264
    %v1281 = vunpack.c.l.b16 %v1265
    %v1282 = vunpack.c.l.b16 %v1266
    %v1283 = vunpack.c.l.b16 %v1267
    %v1284 = vunpack.c.l.b16 %v1268
    %v1285 = vpack.c.b16 %v1278, %v1277
    %v1286 = vpack.c.b16 %v1280, %v1279
    %v1287 = vpack.c.b16 %v1282, %v1281
    %v1288 = vpack.c.b16 %v1284, %v1283
    %v1294 = vsel %vm44, %v1260, 0
    %1296 = vmatpush.bf16.msra.mxu0 0
    %1297 = vmatpush.bf16.msra.mxu0 0
    %1298 = vmatpush.bf16.msra.mxu0 0
    %1299 = vmatpush.bf16.msra.mxu0 0
    %1300 = vmatpush.bf16.msra.mxu0 %v1288
    %1301 = vmatpush.bf16.msra.mxu0 %v1287
    %1302 = vmatpush.bf16.msra.mxu0 %v1286
    %1303 = vmatpush.bf16.msra.mxu0 %v1285
    %1304 = vmatmul.bf16.gmra.mxu0 %v1294
    %v1305 = vpop.f32.mrf.mxu0
    %v1306 = vadd.f32 0.0, %v1305
    %v1307 = vpop.f32.mrf.mxu0
    %v1308 = vadd.f32 0.0, %v1307
    %1309 = vdwg.mxu0
    %v1310 = vadd.f32 %v40, %v1306
    %v1311 = vadd.f32 %v41, %v1308
    %v1312 = vmul.f32 %v1310, %v1310
    %v1313 = vmul.f32 %v1311, %v1311
    %v1314 = vsel %vm44, %v1312, 0.0
    %1315 = vadd.xlane.f32.xlu0 %v1314
    %v1316 = vpop.xlane.xlu0 %1315
    %v1317 = vsel %vm44, %v1313, 0.0
    %1318 = vadd.xlane.f32.xlu0 %v1317
    %v1319 = vpop.xlane.xlu0 %1318
    %v1320 = vmul.f32 %v1316, %v57
    %v1321 = vmul.f32 %v1319, %v57
    %v1322 = vadd.f32 %v1320, 1e-06
    %v1323 = vadd.f32 %v1321, 1e-06
    %v1324 = vrsqrt.pop %v1322
    %v1325 = vmul.f32 %v1324, %v1322
    %v1326 = vmul.f32 %v1325, %v1324
    %v1327 = vmul.f32 0.5, %v1326
    %v1328 = vsub.f32 1.5, %v1327
    %v1329 = vmul.f32 %v1324, %v1328
    %vm1330 = vweird.f32 %v1322
    %vm1331 = vweird.f32 %v1324
    %vm1332 = vmor %vm1330, %vm1331
    %v1333 = vsel %vm1332, %v1324, %v1329
    %v1334 = vrsqrt.pop %v1323
    %v1335 = vmul.f32 %v1334, %v1323
    %v1336 = vmul.f32 %v1335, %v1334
    %v1337 = vmul.f32 0.5, %v1336
    %v1338 = vsub.f32 1.5, %v1337
    %v1339 = vmul.f32 %v1334, %v1338
    %vm1340 = vweird.f32 %v1323
    %vm1341 = vweird.f32 %v1334
    %vm1342 = vmor %vm1340, %vm1341
    %v1343 = vsel %vm1342, %v1334, %v1339
    %v1344 = vmul.f32 %v1310, %v1333
    %v1345 = vmul.f32 %v1311, %v1343
    %v1346 = vld [vmem:[%s7] sm:$0x1]
    %v1348 = vperm.slane %v1346, 0
    %v1350 = vmul.f32 %v1344, %v1348
    %v1351 = vmul.f32 %v1345, %v1348
    %v1352 = vpack.c.bf16 %v1351, %v1350
    %v1353 = vld [vmem:[%s3] sm:$0xff]
    %v1354 = vld [vmem:[%s3 + $0x8] sm:$0xff]
    %v1355 = vld [vmem:[%s3 + $0x10] sm:$0xff]
    %v1356 = vld [vmem:[%s3 + $0x18] sm:$0xff]
    %v1357 = vld [vmem:[%s3 + $0x20] sm:$0xff]
    %v1358 = vld [vmem:[%s3 + $0x28] sm:$0xff]
    %v1359 = vld [vmem:[%s3 + $0x30] sm:$0xff]
    %v1360 = vld [vmem:[%s3 + $0x38] sm:$0xff]
    %v1369 = vunpack.c.l.b16 %v1353
    %v1370 = vunpack.c.h.b16 %v1353
    %v1371 = vunpack.c.l.b16 %v1354
    %v1372 = vunpack.c.h.b16 %v1354
    %v1373 = vunpack.c.l.b16 %v1355
    %v1374 = vunpack.c.h.b16 %v1355
    %v1375 = vunpack.c.l.b16 %v1356
    %v1376 = vunpack.c.h.b16 %v1356
    %v1377 = vunpack.c.l.b16 %v1357
    %v1378 = vunpack.c.h.b16 %v1357
    %v1379 = vunpack.c.l.b16 %v1358
    %v1380 = vunpack.c.h.b16 %v1358
    %v1381 = vunpack.c.l.b16 %v1359
    %v1382 = vunpack.c.h.b16 %v1359
    %v1383 = vunpack.c.l.b16 %v1360
    %v1384 = vunpack.c.h.b16 %v1360
    %v1385 = vpack.c.b16 %v1371, %v1369
    %v1386 = vpack.c.b16 %v1372, %v1370
    %v1387 = vpack.c.b16 %v1375, %v1373
    %v1388 = vpack.c.b16 %v1376, %v1374
    %v1389 = vpack.c.b16 %v1379, %v1377
    %v1390 = vpack.c.b16 %v1380, %v1378
    %v1391 = vpack.c.b16 %v1383, %v1381
    %v1392 = vpack.c.b16 %v1384, %v1382
    %v1402 = vsel %vm44, %v1352, 0
    %1404 = vmatpush.bf16.msra.mxu0 0
    %1405 = vmatpush.bf16.msra.mxu0 0
    %1406 = vmatpush.bf16.msra.mxu0 0
    %1407 = vmatpush.bf16.msra.mxu0 0
    %1408 = vmatpush.bf16.msra.mxu0 %v1391
    %1409 = vmatpush.bf16.msra.mxu0 %v1389
    %1410 = vmatpush.bf16.msra.mxu0 %v1387
    %1411 = vmatpush.bf16.msra.mxu0 %v1385
    %1412 = vmatmul.bf16.gmra.mxu0 %v1402
    %v1413 = vpop.f32.mrf.mxu0
    %v1414 = vadd.f32 0.0, %v1413
    %v1415 = vpop.f32.mrf.mxu0
    %v1416 = vadd.f32 0.0, %v1415
    %1417 = vdwg.mxu0
    %1418 = vmatpush.bf16.msra.mxu0 0
    %1419 = vmatpush.bf16.msra.mxu0 0
    %1420 = vmatpush.bf16.msra.mxu0 0
    %1421 = vmatpush.bf16.msra.mxu0 0
    %1422 = vmatpush.bf16.msra.mxu0 %v1392
    %1423 = vmatpush.bf16.msra.mxu0 %v1390
    %1424 = vmatpush.bf16.msra.mxu0 %v1388
    %1425 = vmatpush.bf16.msra.mxu0 %v1386
    %1426 = vmatmul.bf16.gmra.mxu0 %v1402
    %v1427 = vpop.f32.mrf.mxu0
    %v1428 = vadd.f32 0.0, %v1427
    %v1429 = vpop.f32.mrf.mxu0
    %v1430 = vadd.f32 0.0, %v1429
    %1431 = vdwg.mxu0
    %v1432 = vld [vmem:[%s5] sm:$0xff]
    %v1433 = vld [vmem:[%s5 + $0x8] sm:$0xff]
    %v1434 = vld [vmem:[%s5 + $0x10] sm:$0xff]
    %v1435 = vld [vmem:[%s5 + $0x18] sm:$0xff]
    %v1436 = vld [vmem:[%s5 + $0x20] sm:$0xff]
    %v1437 = vld [vmem:[%s5 + $0x28] sm:$0xff]
    %v1438 = vld [vmem:[%s5 + $0x30] sm:$0xff]
    %v1439 = vld [vmem:[%s5 + $0x38] sm:$0xff]
    %v1448 = vunpack.c.l.b16 %v1432
    %v1449 = vunpack.c.h.b16 %v1432
    %v1450 = vunpack.c.l.b16 %v1433
    %v1451 = vunpack.c.h.b16 %v1433
    %v1452 = vunpack.c.l.b16 %v1434
    %v1453 = vunpack.c.h.b16 %v1434
    %v1454 = vunpack.c.l.b16 %v1435
    %v1455 = vunpack.c.h.b16 %v1435
    %v1456 = vunpack.c.l.b16 %v1436
    %v1457 = vunpack.c.h.b16 %v1436
    %v1458 = vunpack.c.l.b16 %v1437
    %v1459 = vunpack.c.h.b16 %v1437
    %v1460 = vunpack.c.l.b16 %v1438
    %v1461 = vunpack.c.h.b16 %v1438
    %v1462 = vunpack.c.l.b16 %v1439
    %v1463 = vunpack.c.h.b16 %v1439
    %v1464 = vpack.c.b16 %v1450, %v1448
    %v1465 = vpack.c.b16 %v1451, %v1449
    %v1466 = vpack.c.b16 %v1454, %v1452
    %v1467 = vpack.c.b16 %v1455, %v1453
    %v1468 = vpack.c.b16 %v1458, %v1456
    %v1469 = vpack.c.b16 %v1459, %v1457
    %v1470 = vpack.c.b16 %v1462, %v1460
    %v1471 = vpack.c.b16 %v1463, %v1461
    %1480 = vmatpush.bf16.msra.mxu0 0
    %1481 = vmatpush.bf16.msra.mxu0 0
    %1482 = vmatpush.bf16.msra.mxu0 0
    %1483 = vmatpush.bf16.msra.mxu0 0
    %1484 = vmatpush.bf16.msra.mxu0 %v1470
    %1485 = vmatpush.bf16.msra.mxu0 %v1468
    %1486 = vmatpush.bf16.msra.mxu0 %v1466
    %1487 = vmatpush.bf16.msra.mxu0 %v1464
    %1488 = vmatmul.bf16.gmra.mxu0 %v1402
    %v1489 = vpop.f32.mrf.mxu0
    %v1490 = vadd.f32 0.0, %v1489
    %v1491 = vpop.f32.mrf.mxu0
    %v1492 = vadd.f32 0.0, %v1491
    %1493 = vdwg.mxu0
    %1494 = vmatpush.bf16.msra.mxu0 0
    %1495 = vmatpush.bf16.msra.mxu0 0
    %1496 = vmatpush.bf16.msra.mxu0 0
    %1497 = vmatpush.bf16.msra.mxu0 0
    %1498 = vmatpush.bf16.msra.mxu0 %v1471
    %1499 = vmatpush.bf16.msra.mxu0 %v1469
    %1500 = vmatpush.bf16.msra.mxu0 %v1467
    %1501 = vmatpush.bf16.msra.mxu0 %v1465
    %1502 = vmatmul.bf16.gmra.mxu0 %v1402
    %v1503 = vpop.f32.mrf.mxu0
    %v1504 = vadd.f32 0.0, %v1503
    %v1505 = vpop.f32.mrf.mxu0
    %v1506 = vadd.f32 0.0, %v1505
    %1507 = vdwg.mxu0
    %v1508 = vsub.f32 0.0, %v1414
    %v1509 = vsub.f32 0.0, %v1428
    %v1510 = vsub.f32 0.0, %v1416
    %v1511 = vsub.f32 0.0, %v1430
    %v1512 = vmul.f32 %v1508, 1.442695
    %v1513 = vpow.pop %v1512
    %v1514 = vmul.f32 %v1509, 1.442695
    %v1515 = vpow.pop %v1514
    %v1516 = vmul.f32 %v1510, 1.442695
    %v1517 = vpow.pop %v1516
    %v1518 = vmul.f32 %v1511, 1.442695
    %v1519 = vpow.pop %v1518
    %v1520 = vadd.f32 %v1513, 1.0
    %v1521 = vadd.f32 %v1515, 1.0
    %v1522 = vadd.f32 %v1517, 1.0
    %v1523 = vadd.f32 %v1519, 1.0
    %v1524 = vrcp.pop %v1520
    %v1525 = vrcp.pop %v1521
    %v1526 = vrcp.pop %v1522
    %v1527 = vrcp.pop %v1523
    %v1528 = vmul.f32 %v1414, %v1524
    %v1529 = vmul.f32 %v1428, %v1525
    %v1530 = vmul.f32 %v1416, %v1526
    %v1531 = vmul.f32 %v1430, %v1527
    %v1532 = vmul.f32 %v1528, %v1490
    %v1533 = vmul.f32 %v1529, %v1504
    %v1534 = vmul.f32 %v1530, %v1492
    %v1535 = vmul.f32 %v1531, %v1506
    %v1536 = vpack.c.bf16 %v1534, %v1532
    %v1537 = vpack.c.bf16 %v1535, %v1533
    %v1538 = vld [vmem:[%s4] sm:$0xf]
    %v1539 = vld [vmem:[%s4 + $0x4] sm:$0xf]
    %v1540 = vld [vmem:[%s4 + $0x8] sm:$0xf]
    %v1541 = vld [vmem:[%s4 + $0xc] sm:$0xf]
    %v1542 = vld [vmem:[%s4 + $0x10] sm:$0xf]
    %v1543 = vld [vmem:[%s4 + $0x14] sm:$0xf]
    %v1544 = vld [vmem:[%s4 + $0x18] sm:$0xf]
    %v1545 = vld [vmem:[%s4 + $0x1c] sm:$0xf]
    %v1546 = vld [vmem:[%s4 + $0x20] sm:$0xf]
    %v1547 = vld [vmem:[%s4 + $0x24] sm:$0xf]
    %v1548 = vld [vmem:[%s4 + $0x28] sm:$0xf]
    %v1549 = vld [vmem:[%s4 + $0x2c] sm:$0xf]
    %v1550 = vld [vmem:[%s4 + $0x30] sm:$0xf]
    %v1551 = vld [vmem:[%s4 + $0x34] sm:$0xf]
    %v1552 = vld [vmem:[%s4 + $0x38] sm:$0xf]
    %v1553 = vld [vmem:[%s4 + $0x3c] sm:$0xf]
    %v1554 = vld [vmem:[%s4 + $0x40] sm:$0xf]
    %v1555 = vld [vmem:[%s4 + $0x44] sm:$0xf]
    %v1556 = vld [vmem:[%s4 + $0x48] sm:$0xf]
    %v1557 = vld [vmem:[%s4 + $0x4c] sm:$0xf]
    %v1558 = vld [vmem:[%s4 + $0x50] sm:$0xf]
    %v1559 = vld [vmem:[%s4 + $0x54] sm:$0xf]
    %v1560 = vld [vmem:[%s4 + $0x58] sm:$0xf]
    %v1561 = vld [vmem:[%s4 + $0x5c] sm:$0xf]
    %v1586 = vunpack.c.l.b16 %v1538
    %v1587 = vunpack.c.l.b16 %v1539
    %v1588 = vunpack.c.l.b16 %v1540
    %v1589 = vunpack.c.l.b16 %v1541
    %v1590 = vunpack.c.l.b16 %v1542
    %v1591 = vunpack.c.l.b16 %v1543
    %v1592 = vunpack.c.l.b16 %v1544
    %v1593 = vunpack.c.l.b16 %v1545
    %v1594 = vunpack.c.l.b16 %v1546
    %v1595 = vunpack.c.l.b16 %v1547
    %v1596 = vunpack.c.l.b16 %v1548
    %v1597 = vunpack.c.l.b16 %v1549
    %v1598 = vunpack.c.l.b16 %v1550
    %v1599 = vunpack.c.l.b16 %v1551
    %v1600 = vunpack.c.l.b16 %v1552
    %v1601 = vunpack.c.l.b16 %v1553
    %v1602 = vunpack.c.l.b16 %v1554
    %v1603 = vunpack.c.l.b16 %v1555
    %v1604 = vunpack.c.l.b16 %v1556
    %v1605 = vunpack.c.l.b16 %v1557
    %v1606 = vunpack.c.l.b16 %v1558
    %v1607 = vunpack.c.l.b16 %v1559
    %v1608 = vunpack.c.l.b16 %v1560
    %v1609 = vunpack.c.l.b16 %v1561
    %v1610 = vpack.c.b16 %v1587, %v1586
    %v1611 = vpack.c.b16 %v1589, %v1588
    %v1612 = vpack.c.b16 %v1591, %v1590
    %v1613 = vpack.c.b16 %v1593, %v1592
    %v1614 = vpack.c.b16 %v1595, %v1594
    %v1615 = vpack.c.b16 %v1597, %v1596
    %v1616 = vpack.c.b16 %v1599, %v1598
    %v1617 = vpack.c.b16 %v1601, %v1600
    %v1618 = vpack.c.b16 %v1603, %v1602
    %v1619 = vpack.c.b16 %v1605, %v1604
    %v1620 = vpack.c.b16 %v1607, %v1606
    %v1621 = vpack.c.b16 %v1609, %v1608
    %v1635 = vsel %vm44, %v1537, 0
    %1637 = vmatpush.bf16.msra.mxu0 %v1617
    %1638 = vmatpush.bf16.msra.mxu0 %v1616
    %1639 = vmatpush.bf16.msra.mxu0 %v1615
    %1640 = vmatpush.bf16.msra.mxu0 %v1614
    %1641 = vmatpush.bf16.msra.mxu0 %v1613
    %1642 = vmatpush.bf16.msra.mxu0 %v1612
    %1643 = vmatpush.bf16.msra.mxu0 %v1611
    %1644 = vmatpush.bf16.msra.mxu0 %v1610
    %1645 = vmatmul.bf16.gmra.mxu0 %v1536
    %v1646 = vpop.f32.mrf.mxu0
    %v1647 = vadd.f32 0.0, %v1646
    %v1648 = vpop.f32.mrf.mxu0
    %v1649 = vadd.f32 0.0, %v1648
    %1650 = vdwg.mxu0
    %1651 = vmatpush.bf16.msra.mxu0 0
    %1652 = vmatpush.bf16.msra.mxu0 0
    %1653 = vmatpush.bf16.msra.mxu0 0
    %1654 = vmatpush.bf16.msra.mxu0 0
    %1655 = vmatpush.bf16.msra.mxu0 %v1621
    %1656 = vmatpush.bf16.msra.mxu0 %v1620
    %1657 = vmatpush.bf16.msra.mxu0 %v1619
    %1658 = vmatpush.bf16.msra.mxu0 %v1618
    %1659 = vmatmul.bf16.gmra.mxu0 %v1635
    %v1660 = vpop.f32.mrf.mxu0
    %v1661 = vadd.f32 %v1647, %v1660
    %v1662 = vpop.f32.mrf.mxu0
    %v1663 = vadd.f32 %v1649, %v1662
    %1664 = vdwg.mxu0
    %v1665 = vadd.f32 %v1310, %v1661
    %v1666 = vadd.f32 %v1311, %v1663
    %1667 = vst.msk [vmem:[#allocation2] sm:$0xff] %vm44, %v1665
    %1668 = vst.msk [vmem:[#allocation2 + $0x8] sm:$0xff] %vm44, %v1666
    // Predicated region
    $region46: #{tpu_custom_call.1} parent=1 // pred_check
      _
    $region47: #{tpu_custom_call.1} parent=1 // pred_check_branch
      %1670 = sbr.rel (0) target = $region49
    $region48: #{tpu_custom_call.1} parent=1 // pred_region
      %1672 = vsyncadd [#allocation3], 0
      %s1673 = sshll.u32 [#allocation2], 4
      %s1674 = int_to_ptr.vmem [resolvable:$true] %s1673
      %s1675 = sshll.u32 %s11, 4
      %s1676 = int_to_ptr.hbm [resolvable:$true] %s1675
      %1681 = dma.vmem_to_hbm [thread:$0]  %s1674, 256, %s1676, [#allocation3], 128, 128, 8
    $region49: #{tpu_custom_call.1} parent=1 // pred_fallthru
      _
    // Predicated region
    $region50: #{tpu_custom_call.1} parent=1 // pred_check
      _
    $region51: #{tpu_custom_call.1} parent=1 // pred_check_branch
      %1683 = sbr.rel (0) target = $region53
    $region52: #{tpu_custom_call.1} parent=1 // pred_region
      %1685 = dma.done [#allocation3], 256
    $region53: #{tpu_custom_call.1} parent=1 // pred_fallthru
      _
    %1686 = vsyncpa [#allocation3], 1

</llo_original>
